<compile_context>
chip_gen: v7x
topology: tpu7x:2x2x1
jax: 0.10.0
libtpu: 0.0.40
codegen_flags: <defaults>
</compile_context>

<pallas_src>
import functools
import math

import jax
import jax.numpy as jnp
from jax import lax
from jax.experimental import pallas as pl
from jax.experimental.pallas import tpu as pltpu


# ----------------------------------------------------------------------------
# DeepPolyConstraints (JAX-side replica of the graph plumbing)
# ----------------------------------------------------------------------------
class DeepPolyConstraints:
    def __init__(self, lbounds, ubounds):
        self.lbounds = lbounds
        self.ubounds = ubounds
        self.previous = None
        self.transformer = None

    @classmethod
    def constraints_from_eps(cls, inputs, eps, clipper):
        return cls(jnp.clip(inputs - eps, *clipper), jnp.clip(inputs + eps, *clipper))

    @classmethod
    def constraints_from_transformer(cls, previous, lslope, lintercept, uslope, uintercept):
        self = cls.__new__(cls)
        self.lbounds = None
        self.ubounds = None
        self.previous = previous
        self.transformer = (lslope, lintercept, uslope, uintercept)
        return self


def get_flattened_shape(input_shape):
    out = 1
    for d in input_shape:
        out *= d
    return out


def _round_up(x, m):
    return ((x + m - 1) // m) * m


# ----------------------------------------------------------------------------
# Pallas kernel: build one (row-block, F-tile) slab of the dense conv matrix
# ----------------------------------------------------------------------------
def _conv_rows_kernel(active_ref, kg_ref, hf_ref, dw_ref, o_ref, *,
                      kH, kW, sh, ph, i_blk, w_out, num_f_tiles):
    # Grid: axis 0 = F tile index t, axis 1 = output-row block rb (innermost,
    # so the t-indexed inputs are DMA'd once per F tile).
    #   active_ref : SMEM (num_row_blocks * num_f_tiles,) i32
    #   kg_ref     : (kH*kW, C_out, f_tile) f32   channel-gathered conv weights
    #   hf_ref     : (1, f_tile)            i32   input row h of each column
    #   dw_ref     : (W_out, f_tile)        i32   w - (j*sw - pw) per (j, column)
    #   o_ref      : (C_out, i_blk*W_out, f_tile) f32  dense rows for this block
    t = pl.program_id(0)
    rb = pl.program_id(1)
    is_active = active_ref[rb * num_f_tiles + t]

    @pl.when(is_active == 0)
    def _zero():
        # No column of this F tile falls in the h-band of any row in the block.
        o_ref[...] = jnp.zeros_like(o_ref)

    @pl.when(is_active != 0)
    def _compute():
        c_out = o_ref.shape[0]
        f_tile = o_ref.shape[-1]
        hf = hf_ref[...]                               # (1, f_tile) i32
        dwc = dw_ref[...]                              # (w_out, f_tile) i32
        # Grid-row-invariant kernel-column masks (hoisted out of the row loop).
        dw_masks = [(dwc == dw)[None, :, :] for dw in range(kW)]
        base_i = rb * i_blk
        for r in range(i_blk):                          # static, small
            # Kernel-row tap index of each column for output spatial row i.
            dh_col = hf - ((base_i + r) * sh - ph)      # (1, f_tile) i32
            out_r = jnp.zeros((c_out, w_out, f_tile), jnp.float32)
            for dw in range(kW):
                # h-selected weight per column (small: no W_out axis).
                ksel = jnp.zeros((c_out, f_tile), jnp.float32)
                for dh in range(kH):
                    ksel = jnp.where(dh_col == dh, kg_ref[dh * kW + dw], ksel)
                # Each (j, f) matches at most one dw -> chained select, no RMW.
                out_r = jnp.where(dw_masks[dw], ksel[:, None, :], out_r)
            # Store per-W_out sublane chunk (static offsets).
            o_ref[:, r * w_out:(r + 1) * w_out, :] = out_r


def _vmem_capacity_bytes():
    try:
        return int(pltpu.get_tpu_info().vmem_capacity_bytes)
    except Exception:
        return 64 * 1024 * 1024  # conservative fallback (v7x per-TC capacity)


def conv_to_dense_transformer(weight, bias, input_shape, stride, padding, f_tile=None):
    N, C_in, H, Win = input_shape
    assert N == 1, "DeepPoly conv transformer assumes a leading batch dim of 1"
    C_out, _, kH, kW = weight.shape
    sh, sw = stride
    ph, pw = padding
    H_out = (H + 2 * ph - kH) // sh + 1
    W_out = (Win + 2 * pw - kW) // sw + 1
    F = get_flattened_shape(input_shape)               # = C_in*H*Win  (N = 1)
    T = kH * kW
    rows = C_out * H_out * W_out

    # ---- row blocking: sublane dim of each output block multiple of 8 -------
    i_blk = 8 // math.gcd(W_out, 8)                    # minimal rows per block
    i_blk = min(i_blk, H_out)
    row_blk = i_blk * W_out                            # %8==0 or == full dim
    num_row_blocks = pl.cdiv(H_out, i_blk)

    # ---- chip-aware F-tile sizing + explicit scoped-VMEM limit --------------
    vmem_cap = _vmem_capacity_bytes()
    vmem_limit = min(vmem_cap // 2, 64 * 1024 * 1024)  # 64 MiB v5e/v6e, 32 MiB v7x
    budget = (vmem_limit * 7) // 10                    # headroom for Mosaic scratch
    cop = _round_up(C_out, 8)
    wop = _round_up(W_out, 8)
    rbp = _round_up(row_blk, 8)
    per_col_bytes = 4 * (2 * (T * cop + 8 + wop)       # double-buffered inputs
                         + 2 * C_out * rbp             # double-buffered output slab
                         + C_out * (wop + 8))          # in-kernel select temps
    f_cap = min(8192, _round_up(F, 128))
    if f_tile is None:
        f_tile = max(128, min(f_cap, (budget // per_col_bytes) // 128 * 128))
    assert f_tile % 128 == 0
    num_f_tiles = pl.cdiv(F, f_tile)                   # last F tile may be partial
    F_cols = num_f_tiles * f_tile                      # padded width of the inputs

    # ---------------- grid-invariant precomputation (hoisted) ----------------
    # Channel-gathered weights: Kg[tap, c_out, f] = weight[c_out, c_in(f), dh, dw]
    w_r = jnp.transpose(weight, (2, 3, 0, 1)).reshape(T, C_out, C_in)
    kg = jnp.broadcast_to(w_r[:, :, :, None], (T, C_out, C_in, H * Win))
    kg = kg.reshape(T, C_out, F).astype(jnp.float32)
    if F_cols > F:
        kg = jnp.pad(kg, ((0, 0), (0, 0), (0, F_cols - F)))

    # Column -> (h, w) decomposition; padded columns get an unreachable sentinel.
    f_idx = jnp.arange(F, dtype=jnp.int32)
    h_f = ((f_idx % (H * Win)) // Win).astype(jnp.int32)
    w_f = (f_idx % Win).astype(jnp.int32)
    if F_cols > F:
        pad_cols = jnp.full((F_cols - F,), -(2 ** 20), jnp.int32)
        h_f = jnp.concatenate([h_f, pad_cols])
        w_f = jnp.concatenate([w_f, pad_cols])
    h_f2 = h_f[None, :]                                           # (1, F_cols)
    j_idx = jnp.arange(W_out, dtype=jnp.int32)
    dw_col = w_f[None, :] - (j_idx * sw - pw)[:, None]            # (W_out, F_cols)

    # Per-(row block, F tile) activity table (scalar-prefetched into SMEM).
    i_arr = jnp.arange(H_out, dtype=jnp.int32)
    dh_all = h_f2 - (i_arr * sh - ph)[:, None]                    # (H_out, F_cols)
    band = (dh_all >= 0) & (dh_all < kH)
    R_pad = num_row_blocks * i_blk
    if R_pad > H_out:
        band = jnp.concatenate(
            [band, jnp.zeros((R_pad - H_out, F_cols), dtype=jnp.bool_)], axis=0)
    active = band.reshape(num_row_blocks, i_blk, num_f_tiles, f_tile).any(axis=(1, 3))
    active = active.astype(jnp.int32).reshape(-1)     # (num_row_blocks*num_f_tiles,)

    kern = functools.partial(
        _conv_rows_kernel, kH=kH, kW=kW, sh=sh, ph=ph,
        i_blk=i_blk, w_out=W_out, num_f_tiles=num_f_tiles)

    cost = pl.CostEstimate(
        flops=int((kW + 1) * C_out * num_row_blocks * row_blk * F_cols),
        transcendentals=0,
        bytes_accessed=int(4 * rows * F + 4 * (T * C_out + W_out + 1) * F_cols),
    )

    # Output last dim is exactly F: the last F tile is a partial block whose
    # out-of-bounds lanes Pallas masks on writeback -> no post-kernel slice copy.
    W3 = pl.pallas_call(
        kern,
        out_shape=jax.ShapeDtypeStruct((C_out, H_out * W_out, F), jnp.float32),
        grid_spec=pltpu.PrefetchScalarGridSpec(
            num_scalar_prefetch=1,
            grid=(num_f_tiles, num_row_blocks),   # rb innermost: kg/hf/dw blocks
                                                  # are constant in rb -> one DMA per tile
            in_specs=[
                pl.BlockSpec((T, C_out, f_tile), lambda t, rb, tbl: (0, 0, t)),
                pl.BlockSpec((1, f_tile), lambda t, rb, tbl: (0, t)),
                pl.BlockSpec((W_out, f_tile), lambda t, rb, tbl: (0, t)),
            ],
            out_specs=pl.BlockSpec((C_out, row_blk, f_tile),
                                   lambda t, rb, tbl: (0, rb, t)),
        ),
        compiler_params=pltpu.CompilerParams(
            dimension_semantics=("parallel", "parallel"),
            vmem_limit_bytes=int(vmem_limit)),
        cost_estimate=cost,
    )(active, kg, h_f2, dw_col)

    W_dense = W3.reshape(rows, F)                                 # contiguous, free
    b_dense = jnp.broadcast_to(bias[:, None, None],
                               (C_out, H_out, W_out)).reshape(-1)
    return W_dense, b_dense


# ----------------------------------------------------------------------------
# Module wrapper (mirrors the PyTorch DeepPolyConv2D)
# ----------------------------------------------------------------------------
class DeepPolyConv2D:
    def __init__(self, weight, bias, stride, padding, input_shape, f_tile=None):
        self.input_shape = input_shape
        self.W = weight
        self.b = bias
        self.stride = stride
        self.padding = padding
        self.f_tile = f_tile

    def forward(self, previous):
        W_dense, b_dense = conv_to_dense_transformer(
            self.W, self.b, self.input_shape, self.stride, self.padding,
            f_tile=self.f_tile)
        return DeepPolyConstraints.constraints_from_transformer(
            previous, W_dense, b_dense, W_dense, b_dense)


# ----------------------------------------------------------------------------
# Reference + tests
# ----------------------------------------------------------------------------
def _reference_dense(weight, bias, input_shape, stride, padding):
    _, C_in, H, Win = input_shape
    C_out, _, kH, kW = weight.shape
    F = get_flattened_shape(input_shape)
    H_out = (H + 2 * padding[0] - kH) // stride[0] + 1
    W_out = (Win + 2 * padding[1] - kW) // stride[1] + 1
    eye = jnp.eye(F, dtype=jnp.float32).reshape(F, C_in, H, Win)
    ref = lax.conv_general_dilated(
        eye, weight, window_strides=stride,
        padding=[(padding[0], padding[0]), (padding[1], padding[1])],
        dimension_numbers=("NCHW", "OIHW", "NCHW"),
        precision=lax.Precision.HIGHEST)                    # (F, C_out, H_out, W_out)
    W_ref = jnp.transpose(ref, (1, 2, 3, 0)).reshape(C_out * H_out * W_out, F)
    b_ref = jnp.broadcast_to(bias[:, None, None], (C_out, H_out, W_out)).reshape(-1)
    return W_ref, b_ref


def _run_case(key, input_shape, C_out, ksz, stride, padding, f_tile=None):
    kkey, bkey, xkey = jax.random.split(key, 3)
    _, C_in, _, _ = input_shape
    weight = 0.1 * jax.random.normal(kkey, (C_out, C_in, ksz, ksz), jnp.float32)
    bias = 0.1 * jax.random.normal(bkey, (C_out,), jnp.float32)
    x = jax.random.normal(xkey, input_shape, jnp.float32)

    previous = DeepPolyConstraints.constraints_from_eps(
        x.reshape(1, -1), 0.01, (0.0, 1.0))
    module = DeepPolyConv2D(weight, bias, stride, padding, input_shape, f_tile=f_tile)
    constraints = module.forward(previous)
    W_dense, b_dense, _, _ = constraints.transformer
    jax.block_until_ready((W_dense, b_dense))

    W_ref, b_ref = _reference_dense(weight, bias, input_shape, stride, padding)
    assert W_dense.shape == W_ref.shape
    assert b_dense.shape == b_ref.shape
    assert jnp.allclose(W_dense, W_ref, atol=1e-5, rtol=1e-5)
    assert jnp.allclose(b_dense, b_ref, atol=1e-6, rtol=1e-6)


if __name__ == "__main__":
    key = jax.random.PRNGKey(0)
    k1, k2, k3, k4 = jax.random.split(key, 4)

    # Case 1: stride-1 padded 3x3 conv, F = 1024 (single lane-dense F tile,
    # W_out = 16 so rows are naturally sublane-aligned).
    _run_case(k1, (1, 4, 16, 16), 8, 3, (1, 1), (1, 1))
    # Case 2: strided conv, F = 192 (partial/masked final F tile) and
    # W_out = 4 (row-merged blocks of 2 output rows for 8-sublane stores).
    _run_case(k2, (1, 3, 8, 8), 8, 3, (2, 2), (1, 1))
    # Case 3: same as case 1 with a forced small F tile so that the inactive
    # F-tile memset path (pl.when skip) is actually exercised.
    _run_case(k3, (1, 4, 16, 16), 8, 3, (1, 1), (1, 1), f_tile=128)
    # Case 4: odd shapes everywhere — no padding, F = 147, H_out = W_out = 3,
    # single row block equal to the full (non-multiple-of-8) row dim.
    _run_case(k4, (1, 3, 7, 7), 8, 3, (2, 2), (0, 0))

    print("KERNEL_OK")
</pallas_src>

<mosaic_0001>
module attributes {stable_mosaic.version = 11 : i64} {
  func.func @_conv_rows_kernel(%arg0: i32, %arg1: i32, %arg2: memref<16xi32, #tpu.memory_space<smem>>, %arg3: memref<9x8x1024xf32, #tpu.memory_space<vmem>>, %arg4: memref<1x1024xi32, #tpu.memory_space<vmem>>, %arg5: memref<16x1024xi32, #tpu.memory_space<vmem>>, %arg6: memref<8x16x1024xf32, #tpu.memory_space<vmem>>) attributes {dimension_semantics = [#tpu.dimension_semantics<parallel>, #tpu.dimension_semantics<parallel>], iteration_bounds = array<i64: 1, 16>, scalar_prefetch = 1 : i64, scratch_operands = 0 : i64, tpu.core_type = #tpu.core_type<tc>, window_params = [{transform_indices = @transform_0, window_bounds = array<i64: 9, 8, 1024>}, {transform_indices = @transform_1, window_bounds = array<i64: 1, 1024>}, {transform_indices = @transform_2, window_bounds = array<i64: 16, 1024>}, {transform_indices = @transform_3, window_bounds = array<i64: 8, 16, 1024>}]} {
    %c1_i32 = arith.constant 1 : i32
    %0 = arith.muli %arg1, %c1_i32 : i32
    %1 = arith.addi %0, %arg0 : i32
    %2 = arith.index_cast %1 : i32 to index
    %3 = memref.load %arg2[%2] : memref<16xi32, #tpu.memory_space<smem>>
    %c0_i32 = arith.constant 0 : i32
    %4 = arith.cmpi eq, %3, %c0_i32 : i32
    %5 = arith.extui %4 : i1 to i32
    %c0_i32_0 = arith.constant 0 : i32
    %6 = arith.cmpi ne, %5, %c0_i32_0 : i32
    scf.if %6 {
      %cst = arith.constant 0.000000e+00 : f32
      %10 = vector.broadcast %cst : f32 to vector<8x16x1024xf32>
      %c0 = arith.constant 0 : index
      %c0_3 = arith.constant 0 : index
      %c0_4 = arith.constant 0 : index
      %11 = vector.load %arg6[%c0, %c0_3, %c0_4] : memref<8x16x1024xf32, #tpu.memory_space<vmem>>, vector<8x16x1024xf32>
      tpu.vector_store %arg6[%c0, %c0_3, %c0_4], %10 {strides = array<i32>} : memref<8x16x1024xf32, #tpu.memory_space<vmem>>, vector<8x16x1024xf32>,
    } else {
    }
    %c0_i32_1 = arith.constant 0 : i32
    %7 = arith.cmpi ne, %3, %c0_i32_1 : i32
    %8 = arith.extui %7 : i1 to i32
    %c0_i32_2 = arith.constant 0 : i32
    %9 = arith.cmpi ne, %8, %c0_i32_2 : i32
    scf.if %9 {
      %c0 = arith.constant 0 : index
      %c0_3 = arith.constant 0 : index
      %10 = vector.load %arg4[%c0, %c0_3] : memref<1x1024xi32, #tpu.memory_space<vmem>>, vector<1x1024xi32>
      %c0_4 = arith.constant 0 : index
      %c0_5 = arith.constant 0 : index
      %11 = vector.load %arg5[%c0_4, %c0_5] : memref<16x1024xi32, #tpu.memory_space<vmem>>, vector<16x1024xi32>
      %c0_i32_6 = arith.constant 0 : i32
      %12 = vector.broadcast %c0_i32_6 : i32 to vector<16x1024xi32>
      %13 = arith.cmpi eq, %11, %12 : vector<16x1024xi32>
      %14 = vector.shape_cast %13 : vector<16x1024xi1> to vector<1x16x1024xi1>
      %c1_i32_7 = arith.constant 1 : i32
      %15 = vector.broadcast %c1_i32_7 : i32 to vector<16x1024xi32>
      %16 = arith.cmpi eq, %11, %15 : vector<16x1024xi32>
      %17 = vector.shape_cast %16 : vector<16x1024xi1> to vector<1x16x1024xi1>
      %c2_i32 = arith.constant 2 : i32
      %18 = vector.broadcast %c2_i32 : i32 to vector<16x1024xi32>
      %19 = arith.cmpi eq, %11, %18 : vector<16x1024xi32>
      %20 = vector.shape_cast %19 : vector<16x1024xi1> to vector<1x16x1024xi1>
      %c1_i32_8 = arith.constant 1 : i32
      %21 = arith.muli %arg1, %c1_i32_8 : i32
      %c0_i32_9 = arith.constant 0 : i32
      %22 = arith.addi %21, %c0_i32_9 : i32
      %c1_i32_10 = arith.constant 1 : i32
      %23 = arith.muli %22, %c1_i32_10 : i32
      %c1_i32_11 = arith.constant 1 : i32
      %24 = arith.subi %23, %c1_i32_11 : i32
      %25 = vector.broadcast %24 : i32 to vector<1x1024xi32>
      %26 = arith.subi %10, %25 : vector<1x1024xi32>
      %cst = arith.constant 0.000000e+00 : f32
      %27 = vector.broadcast %cst : f32 to vector<8x16x1024xf32>
      %cst_12 = arith.constant 0.000000e+00 : f32
      %28 = vector.broadcast %cst_12 : f32 to vector<8x1024xf32>
      %c0_i32_13 = arith.constant 0 : i32
      %29 = vector.broadcast %c0_i32_13 : i32 to vector<1x1024xi32>
      %30 = arith.cmpi eq, %26, %29 : vector<1x1024xi32>
      %c0_14 = arith.constant 0 : index
      %c0_15 = arith.constant 0 : index
      %c0_16 = arith.constant 0 : index
      %31 = vector.load %arg3[%c0_14, %c0_15, %c0_16] : memref<9x8x1024xf32, #tpu.memory_space<vmem>>, vector<1x8x1024xf32>
      %32 = vector.shape_cast %31 : vector<1x8x1024xf32> to vector<8x1024xf32>
      %33 = vector.shape_cast %30 : vector<1x1024xi1> to vector<1x1024xi1>
      %34 = vector.broadcast %33 : vector<1x1024xi1> to vector<8x1024xi1>
      %35 = arith.select %34, %32, %28 : vector<8x1024xi1>, vector<8x1024xf32>
      %c1_i32_17 = arith.constant 1 : i32
      %36 = vector.broadcast %c1_i32_17 : i32 to vector<1x1024xi32>
      %37 = arith.cmpi eq, %26, %36 : vector<1x1024xi32>
      %c3 = arith.constant 3 : index
      %c0_18 = arith.constant 0 : index
      %c0_19 = arith.constant 0 : index
      %38 = vector.load %arg3[%c3, %c0_18, %c0_19] : memref<9x8x1024xf32, #tpu.memory_space<vmem>>, vector<1x8x1024xf32>
      %39 = vector.shape_cast %38 : vector<1x8x1024xf32> to vector<8x1024xf32>
      %40 = vector.shape_cast %37 : vector<1x1024xi1> to vector<1x1024xi1>
      %41 = vector.broadcast %40 : vector<1x1024xi1> to vector<8x1024xi1>
      %42 = arith.select %41, %39, %35 : vector<8x1024xi1>, vector<8x1024xf32>
      %c2_i32_20 = arith.constant 2 : i32
      %43 = vector.broadcast %c2_i32_20 : i32 to vector<1x1024xi32>
      %44 = arith.cmpi eq, %26, %43 : vector<1x1024xi32>
      %c6 = arith.constant 6 : index
      %c0_21 = arith.constant 0 : index
      %c0_22 = arith.constant 0 : index
      %45 = vector.load %arg3[%c6, %c0_21, %c0_22] : memref<9x8x1024xf32, #tpu.memory_space<vmem>>, vector<1x8x1024xf32>
      %46 = vector.shape_cast %45 : vector<1x8x1024xf32> to vector<8x1024xf32>
      %47 = vector.shape_cast %44 : vector<1x1024xi1> to vector<1x1024xi1>
      %48 = vector.broadcast %47 : vector<1x1024xi1> to vector<8x1024xi1>
      %49 = arith.select %48, %46, %42 : vector<8x1024xi1>, vector<8x1024xf32>
      %50 = vector.shape_cast %49 : vector<8x1024xf32> to vector<8x1x1024xf32>
      %51 = vector.shape_cast %14 : vector<1x16x1024xi1> to vector<1x16x1024xi1>
      %52 = vector.broadcast %51 : vector<1x16x1024xi1> to vector<8x16x1024xi1>
      %53 = vector.shape_cast %50 : vector<8x1x1024xf32> to vector<8x1x1024xf32>
      %54 = vector.broadcast %53 : vector<8x1x1024xf32> to vector<8x16x1024xf32>
      %55 = arith.select %52, %54, %27 : vector<8x16x1024xi1>, vector<8x16x1024xf32>
      %cst_23 = arith.constant 0.000000e+00 : f32
      %56 = vector.broadcast %cst_23 : f32 to vector<8x1024xf32>
      %c0_i32_24 = arith.constant 0 : i32
      %57 = vector.broadcast %c0_i32_24 : i32 to vector<1x1024xi32>
      %58 = arith.cmpi eq, %26, %57 : vector<1x1024xi32>
      %c1 = arith.constant 1 : index
      %c0_25 = arith.constant 0 : index
      %c0_26 = arith.constant 0 : index
      %59 = vector.load %arg3[%c1, %c0_25, %c0_26] : memref<9x8x1024xf32, #tpu.memory_space<vmem>>, vector<1x8x1024xf32>
      %60 = vector.shape_cast %59 : vector<1x8x1024xf32> to vector<8x1024xf32>
      %61 = vector.shape_cast %58 : vector<1x1024xi1> to vector<1x1024xi1>
      %62 = vector.broadcast %61 : vector<1x1024xi1> to vector<8x1024xi1>
      %63 = arith.select %62, %60, %56 : vector<8x1024xi1>, vector<8x1024xf32>
      %c1_i32_27 = arith.constant 1 : i32
      %64 = vector.broadcast %c1_i32_27 : i32 to vector<1x1024xi32>
      %65 = arith.cmpi eq, %26, %64 : vector<1x1024xi32>
      %c4 = arith.constant 4 : index
      %c0_28 = arith.constant 0 : index
      %c0_29 = arith.constant 0 : index
      %66 = vector.load %arg3[%c4, %c0_28, %c0_29] : memref<9x8x1024xf32, #tpu.memory_space<vmem>>, vector<1x8x1024xf32>
      %67 = vector.shape_cast %66 : vector<1x8x1024xf32> to vector<8x1024xf32>
      %68 = vector.shape_cast %65 : vector<1x1024xi1> to vector<1x1024xi1>
      %69 = vector.broadcast %68 : vector<1x1024xi1> to vector<8x1024xi1>
      %70 = arith.select %69, %67, %63 : vector<8x1024xi1>, vector<8x1024xf32>
      %c2_i32_30 = arith.constant 2 : i32
      %71 = vector.broadcast %c2_i32_30 : i32 to vector<1x1024xi32>
      %72 = arith.cmpi eq, %26, %71 : vector<1x1024xi32>
      %c7 = arith.constant 7 : index
      %c0_31 = arith.constant 0 : index
      %c0_32 = arith.constant 0 : index
      %73 = vector.load %arg3[%c7, %c0_31, %c0_32] : memref<9x8x1024xf32, #tpu.memory_space<vmem>>, vector<1x8x1024xf32>
      %74 = vector.shape_cast %73 : vector<1x8x1024xf32> to vector<8x1024xf32>
      %75 = vector.shape_cast %72 : vector<1x1024xi1> to vector<1x1024xi1>
      %76 = vector.broadcast %75 : vector<1x1024xi1> to vector<8x1024xi1>
      %77 = arith.select %76, %74, %70 : vector<8x1024xi1>, vector<8x1024xf32>
      %78 = vector.shape_cast %77 : vector<8x1024xf32> to vector<8x1x1024xf32>
      %79 = vector.shape_cast %17 : vector<1x16x1024xi1> to vector<1x16x1024xi1>
      %80 = vector.broadcast %79 : vector<1x16x1024xi1> to vector<8x16x1024xi1>
      %81 = vector.shape_cast %78 : vector<8x1x1024xf32> to vector<8x1x1024xf32>
      %82 = vector.broadcast %81 : vector<8x1x1024xf32> to vector<8x16x1024xf32>
      %83 = arith.select %80, %82, %55 : vector<8x16x1024xi1>, vector<8x16x1024xf32>
      %cst_33 = arith.constant 0.000000e+00 : f32
      %84 = vector.broadcast %cst_33 : f32 to vector<8x1024xf32>
      %c0_i32_34 = arith.constant 0 : i32
      %85 = vector.broadcast %c0_i32_34 : i32 to vector<1x1024xi32>
      %86 = arith.cmpi eq, %26, %85 : vector<1x1024xi32>
      %c2 = arith.constant 2 : index
      %c0_35 = arith.constant 0 : index
      %c0_36 = arith.constant 0 : index
      %87 = vector.load %arg3[%c2, %c0_35, %c0_36] : memref<9x8x1024xf32, #tpu.memory_space<vmem>>, vector<1x8x1024xf32>
      %88 = vector.shape_cast %87 : vector<1x8x1024xf32> to vector<8x1024xf32>
      %89 = vector.shape_cast %86 : vector<1x1024xi1> to vector<1x1024xi1>
      %90 = vector.broadcast %89 : vector<1x1024xi1> to vector<8x1024xi1>
      %91 = arith.select %90, %88, %84 : vector<8x1024xi1>, vector<8x1024xf32>
      %c1_i32_37 = arith.constant 1 : i32
      %92 = vector.broadcast %c1_i32_37 : i32 to vector<1x1024xi32>
      %93 = arith.cmpi eq, %26, %92 : vector<1x1024xi32>
      %c5 = arith.constant 5 : index
      %c0_38 = arith.constant 0 : index
      %c0_39 = arith.constant 0 : index
      %94 = vector.load %arg3[%c5, %c0_38, %c0_39] : memref<9x8x1024xf32, #tpu.memory_space<vmem>>, vector<1x8x1024xf32>
      %95 = vector.shape_cast %94 : vector<1x8x1024xf32> to vector<8x1024xf32>
      %96 = vector.shape_cast %93 : vector<1x1024xi1> to vector<1x1024xi1>
      %97 = vector.broadcast %96 : vector<1x1024xi1> to vector<8x1024xi1>
      %98 = arith.select %97, %95, %91 : vector<8x1024xi1>, vector<8x1024xf32>
      %c2_i32_40 = arith.constant 2 : i32
      %99 = vector.broadcast %c2_i32_40 : i32 to vector<1x1024xi32>
      %100 = arith.cmpi eq, %26, %99 : vector<1x1024xi32>
      %c8 = arith.constant 8 : index
      %c0_41 = arith.constant 0 : index
      %c0_42 = arith.constant 0 : index
      %101 = vector.load %arg3[%c8, %c0_41, %c0_42] : memref<9x8x1024xf32, #tpu.memory_space<vmem>>, vector<1x8x1024xf32>
      %102 = vector.shape_cast %101 : vector<1x8x1024xf32> to vector<8x1024xf32>
      %103 = vector.shape_cast %100 : vector<1x1024xi1> to vector<1x1024xi1>
      %104 = vector.broadcast %103 : vector<1x1024xi1> to vector<8x1024xi1>
      %105 = arith.select %104, %102, %98 : vector<8x1024xi1>, vector<8x1024xf32>
      %106 = vector.shape_cast %105 : vector<8x1024xf32> to vector<8x1x1024xf32>
      %107 = vector.shape_cast %20 : vector<1x16x1024xi1> to vector<1x16x1024xi1>
      %108 = vector.broadcast %107 : vector<1x16x1024xi1> to vector<8x16x1024xi1>
      %109 = vector.shape_cast %106 : vector<8x1x1024xf32> to vector<8x1x1024xf32>
      %110 = vector.broadcast %109 : vector<8x1x1024xf32> to vector<8x16x1024xf32>
      %111 = arith.select %108, %110, %83 : vector<8x16x1024xi1>, vector<8x16x1024xf32>
      %c0_43 = arith.constant 0 : index
      %c0_44 = arith.constant 0 : index
      %c0_45 = arith.constant 0 : index
      %112 = vector.load %arg6[%c0_43, %c0_44, %c0_45] : memref<8x16x1024xf32, #tpu.memory_space<vmem>>, vector<8x16x1024xf32>
      tpu.vector_store %arg6[%c0_43, %c0_44, %c0_45], %111 {strides = array<i32>} : memref<8x16x1024xf32, #tpu.memory_space<vmem>>, vector<8x16x1024xf32>,
    } else {
    }
    return
  }
  func.func @transform_0(%arg0: i32, %arg1: i32, %arg2: memref<16xi32, #tpu.memory_space<smem>>) -> (i32, i32, i32) {
    %c0_i32 = arith.constant 0 : i32
    %c0_i32_0 = arith.constant 0 : i32
    %c0_i32_1 = arith.constant 0 : i32
    return %c0_i32, %c0_i32_0, %arg0 : i32, i32, i32
  }
  func.func @transform_1(%arg0: i32, %arg1: i32, %arg2: memref<16xi32, #tpu.memory_space<smem>>) -> (i32, i32) {
    %c0_i32 = arith.constant 0 : i32
    %c0_i32_0 = arith.constant 0 : i32
    return %c0_i32, %arg0 : i32, i32
  }
  func.func @transform_2(%arg0: i32, %arg1: i32, %arg2: memref<16xi32, #tpu.memory_space<smem>>) -> (i32, i32) {
    %c0_i32 = arith.constant 0 : i32
    %c0_i32_0 = arith.constant 0 : i32
    return %c0_i32, %arg0 : i32, i32
  }
  func.func @transform_3(%arg0: i32, %arg1: i32, %arg2: memref<16xi32, #tpu.memory_space<smem>>) -> (i32, i32, i32) {
    %c0_i32 = arith.constant 0 : i32
    %c0_i32_0 = arith.constant 0 : i32
    return %c0_i32, %arg1, %arg0 : i32, i32, i32
  }
}

</mosaic_0001>

<llo_original>
// kernel: tpu_custom_call.1
$region0: #{tpu_custom_call.1}
  #allocation0 [shape = 'u32[]', space=smem, size = 0x4, offset = 0x4, fixed_abs, tag = 'smem constant byte address 0x4 - core index']
  #allocation1 [shape = 'u32[144,128]{1,0:T(1,128)}', space=vmem, size = 0x12000, scoped, tag = 'internal scratch']
  #allocation2 [shape = 's32[1]{0}', space=sflag, size = 0x4, scoped, tag = 'scoped memory for tpu_custom_call.1']
  #allocation3 [shape = 'u8[512]{0}', space=smem, size = 0x200, scoped, tag = 'prefetched SMEM operand 0']
  #allocation11 [shape = 's32[]', space=sflag, size = 0x4, offset = 0, fixed_abs, tag = 'sflag constant byte address 0x0 - dummy sync flag']
  %s0 = inlined_call_operand.hbm [shape: s32[16], index: 0, kind: input, shape index: {}]
  %s1 = inlined_call_operand.hbm [shape: f32[9,8,1024], index: 1, kind: input, shape index: {}]
  %s2 = inlined_call_operand.hbm [shape: s32[1,1024], index: 2, kind: input, shape index: {}]
  %s3 = inlined_call_operand.hbm [shape: s32[16,1024], index: 3, kind: input, shape index: {}]
  %s4 = inlined_call_operand.hbm [shape: f32[8,256,1024], index: 4, kind: output, shape index: {}]
  %s5 = sld [smem:[#allocation0]]
  $region65: #{tpu_custom_call.1} parent=0
    _
  %s7 = ssub.s32 1, %s5
  %s8 = scalar_select 0, %s7, %s5
  %10 = dma.hbm_to_smem %s0, 16, [#allocation3], [#allocation2]
  %11 = dma.done [#allocation2], 16
  %12 = sfence
  $region1: #{tpu_custom_call.1} parent=0
    #allocation4 [shape = 'u8[294912]{0}', space=vmem, size = 0x48000, scoped, tag = 'input window, operand 1, single buffered']
    #allocation5 [shape = 's32[2]{0}', space=sflag, size = 0x8, scoped, tag = 'scoped memory for tpu_custom_call.1']
    #allocation6 [shape = 's32[2]{0}', space=sflag, size = 0x8, scoped, tag = 'scoped memory for tpu_custom_call.1']
    #allocation7 [shape = 'u8[4096]{0}', space=vmem, size = 0x1000, scoped, tag = 'input window, operand 2, single buffered']
    #allocation8 [shape = 's32[1]{0}', space=sflag, size = 0x4, scoped, tag = 'scoped memory for tpu_custom_call.1']
    #allocation9 [shape = 'u8[65536]{0}', space=vmem, size = 0x10000, scoped, tag = 'input window, operand 3, single buffered']
    #allocation10 [shape = 'u8[1048576]{0}', space=vmem, size = 0x100000, scoped, tag = 'output window, operand 0']
    %13 = vsyncpa [#allocation5], 0
    %14 = vsyncpa [#allocation8], 0
    %15 = vsyncpa [#allocation6], 0
    %s16 = scalar_lea.sflag [#allocation6], 1
    %17 = vsyncpa %s16, 0
    loop: start=0, step=1, limit=18
    $region2: #{tpu_custom_call.1} parent=1 // loop_pre_header
      _
    $region3: #{tpu_custom_call.1} parent=1 // loop_header
      %s19 = sphi 0, %s23
      %p20 = scmp.ge.s32.totalorder %s19, 18
      %s26 = sphi 0, %s38
      %s27 = sphi 0, %s34
      %s28 = sphi 0, %s26
      %s29 = sphi 0, %s27
      %s30 = sphi 0, %s28
      %s31 = sphi 0, %s29
      %s41 = sphi 0, %s43
      %s44 = sphi 0, %s41
      %s45 = sphi 0, %s44
      %s61 = sphi 0, %s45
      %s67 = sphi 0, %s69
      %s70 = sphi 0, %s67
      %s71 = sphi 0, %s70
      %s87 = sphi 0, %s71
      %s93 = sphi 0, %s95
      %s96 = sphi 0, %s93
      %s97 = sphi 0, %s96
      %s113 = sphi 0, %s97
      %s121 = sphi 0, %s123
      %s124 = sphi 0, %s121
      %s125 = sphi 0, %s124
      %s141 = sphi 0, %s125
    $region4: #{tpu_custom_call.1} parent=1 // loop_header_branch
      %22 = sbr.rel (%p20) target = $region8
    $region5: #{tpu_custom_call.1} parent=1 // loop_body
      %s24 = ssub.s32 %s19, 1
      %s25 = ssub.s32 %s19, 2
      %s32 = sadd.s32 1, %s27
      %p33 = scmp.ge.s32.totalorder %s32, 16
      %s34 = scalar_select %p33, 0, %s32
      %s35 = sadd.s32 1, %s26
      %s36 = scalar_select %p33, %s35, %s26
      %p37 = scmp.ge.s32.totalorder %s36, 1
      %s38 = scalar_select %p37, 0, %s36
      %s39 = ssub.s32 %s26, %s38
      %p40 = scmp.eq.s32.totalorder %s39, 0
      %s42 = sadd.s32 %s41, 1
      %s43 = scalar_select %p40, %s41, %s42
      %p46 = pneg %p40
      %p47 = scmp.eq.s32.totalorder %s19, 15
      %p48 = por %p46, %p47
      %p49 = scmp.ne.s32.totalorder %s41, %s44
      %p50 = scmp.eq.s32.totalorder %s19, 0
      %p51 = por %p49, %p50
      %p52 = scmp.ne.s32.totalorder %s41, %s44
      %p53 = scmp.eq.s32.totalorder %s24, 15
      %p54 = por %p52, %p53
      %p55 = scmp.ne.s32.totalorder %s44, %s45
      %p56 = scmp.eq.s32.totalorder %s24, 0
      %p57 = por %p55, %p56
      %p58 = scmp.ne.s32.totalorder %s44, %s45
      %p59 = scmp.eq.s32.totalorder %s25, 15
      %p60 = por %p58, %p59
      %p62 = scmp.ne.s32.totalorder %s45, %s61
      %p63 = scmp.eq.s32.totalorder %s25, 0
      %p64 = por %p62, %p63
      %s65 = ssub.s32 %s26, %s38
      %p66 = scmp.eq.s32.totalorder %s65, 0
      %s68 = sadd.s32 %s67, 1
      %s69 = scalar_select %p66, %s67, %s68
      %p72 = pneg %p66
      %p73 = scmp.eq.s32.totalorder %s19, 15
      %p74 = por %p72, %p73
      %p75 = scmp.ne.s32.totalorder %s67, %s70
      %p76 = scmp.eq.s32.totalorder %s19, 0
      %p77 = por %p75, %p76
      %p78 = scmp.ne.s32.totalorder %s67, %s70
      %p79 = scmp.eq.s32.totalorder %s24, 15
      %p80 = por %p78, %p79
      %p81 = scmp.ne.s32.totalorder %s70, %s71
      %p82 = scmp.eq.s32.totalorder %s24, 0
      %p83 = por %p81, %p82
      %p84 = scmp.ne.s32.totalorder %s70, %s71
      %p85 = scmp.eq.s32.totalorder %s25, 15
      %p86 = por %p84, %p85
      %p88 = scmp.ne.s32.totalorder %s71, %s87
      %p89 = scmp.eq.s32.totalorder %s25, 0
      %p90 = por %p88, %p89
      %s91 = ssub.s32 %s26, %s38
      %p92 = scmp.eq.s32.totalorder %s91, 0
      %s94 = sadd.s32 %s93, 1
      %s95 = scalar_select %p92, %s93, %s94
      %p98 = pneg %p92
      %p99 = scmp.eq.s32.totalorder %s19, 15
      %p100 = por %p98, %p99
      %p101 = scmp.ne.s32.totalorder %s93, %s96
      %p102 = scmp.eq.s32.totalorder %s19, 0
      %p103 = por %p101, %p102
      %p104 = scmp.ne.s32.totalorder %s93, %s96
      %p105 = scmp.eq.s32.totalorder %s24, 15
      %p106 = por %p104, %p105
      %p107 = scmp.ne.s32.totalorder %s96, %s97
      %p108 = scmp.eq.s32.totalorder %s24, 0
      %p109 = por %p107, %p108
      %p110 = scmp.ne.s32.totalorder %s96, %s97
      %p111 = scmp.eq.s32.totalorder %s25, 15
      %p112 = por %p110, %p111
      %p114 = scmp.ne.s32.totalorder %s97, %s113
      %p115 = scmp.eq.s32.totalorder %s25, 0
      %p116 = por %p114, %p115
      %s117 = ssub.s32 %s27, %s34
      %s118 = ssub.s32 %s26, %s38
      %s119 = sor.u32 %s117, %s118
      %p120 = scmp.eq.s32.totalorder %s119, 0
      %s122 = sadd.s32 %s121, 1
      %s123 = scalar_select %p120, %s121, %s122
      %p126 = pneg %p120
      %p127 = scmp.eq.s32.totalorder %s19, 15
      %p128 = por %p126, %p127
      %p129 = scmp.ne.s32.totalorder %s121, %s124
      %p130 = scmp.eq.s32.totalorder %s19, 0
      %p131 = por %p129, %p130
      %p132 = scmp.ne.s32.totalorder %s121, %s124
      %p133 = scmp.eq.s32.totalorder %s24, 15
      %p134 = por %p132, %p133
      %p135 = scmp.ne.s32.totalorder %s124, %s125
      %p136 = scmp.eq.s32.totalorder %s24, 0
      %p137 = por %p135, %p136
      %p138 = scmp.ne.s32.totalorder %s124, %s125
      %p139 = scmp.eq.s32.totalorder %s25, 15
      %p140 = por %p138, %p139
      %p142 = scmp.ne.s32.totalorder %s125, %s141
      %p143 = scmp.eq.s32.totalorder %s25, 0
      %p144 = por %p142, %p143
      %p145 = scmp.le.s32.totalorder 1, %s19
      %p146 = scmp.lt.s32.totalorder %s19, 17
      %p147 = pnand %p145, %p146
      %p148 = pneg %p147
      // Predicated region
      $region9: #{tpu_custom_call.1} parent=5 // pred_check
        _
      $region10: #{tpu_custom_call.1} parent=5 // pred_check_branch
        %150 = sbr.rel (%p147) target = $region12
      $region11: #{tpu_custom_call.1} parent=5 // pred_region
        %s151 = ssub.s32 %s19, 1
        // Predicated region
        $region13: #{tpu_custom_call.1} parent=11 // pred_check
          %p152 = pneg %p57
        $region14: #{tpu_custom_call.1} parent=11 // pred_check_branch
          %154 = sbr.rel (%p152) target = $region16
        $region15: #{tpu_custom_call.1} parent=11 // pred_region
          %s155 = smul.u32 8, %s28
          %s157 = ssub.s32 9216, 9216
          %158 = vsyncadd [#allocation5], %s157
          %s159 = smul.addr %s155, 128
          %s160 = scalar_lea.hbm %s1, %s159
          %s161 = sshll.u32 [#allocation4], 4
          %s162 = int_to_ptr.vmem [resolvable:$true] %s161
          %167 = dma.hbm_to_vmem [thread:$0]  %s160, 9216, %s162, [#allocation5], 1024, 1024, 64
        $region16: #{tpu_custom_call.1} parent=11 // pred_fallthru
          _
        // Predicated region
        $region17: #{tpu_custom_call.1} parent=11 // pred_check
          %p168 = pneg %p83
        $region18: #{tpu_custom_call.1} parent=11 // pred_check_branch
          %170 = sbr.rel (%p168) target = $region20
        $region19: #{tpu_custom_call.1} parent=11 // pred_region
          %s171 = smul.u32 8, %s28
          %s173 = ssub.s32 128, 128
          %174 = vsyncadd [#allocation8], %s173
          %s175 = smul.addr %s171, 16
          %s176 = scalar_lea.hbm %s2, %s175
          %s178 = sshll.u32 [#allocation7], 4
          %s179 = int_to_ptr.vmem [resolvable:$true] %s178
          %181 = dma.hbm_to_vmem [thread:$0]  %s176, 128, %s179, [#allocation8]
        $region20: #{tpu_custom_call.1} parent=11 // pred_fallthru
          _
        // Predicated region
        $region21: #{tpu_custom_call.1} parent=11 // pred_check
          %p182 = pneg %p109
        $region22: #{tpu_custom_call.1} parent=11 // pred_check_branch
          %184 = sbr.rel (%p182) target = $region24
        $region23: #{tpu_custom_call.1} parent=11 // pred_region
          %s185 = smul.u32 8, %s28
          %s187 = ssub.s32 2048, 2048
          %188 = vsyncadd [#allocation8], %s187
          %s189 = smul.addr %s185, 128
          %s190 = scalar_lea.hbm %s3, %s189
          %s191 = sshll.u32 [#allocation9], 4
          %s192 = int_to_ptr.vmem [resolvable:$true] %s191
          %197 = dma.hbm_to_vmem [thread:$0]  %s190, 2048, %s192, [#allocation8], 1024, 1024, 64
        $region24: #{tpu_custom_call.1} parent=11 // pred_fallthru
          _
      $region12: #{tpu_custom_call.1} parent=5 // pred_fallthru
        _
      %p198 = scmp.lt.s32.totalorder %s19, 16
      // Predicated region
      $region25: #{tpu_custom_call.1} parent=5 // pred_check
        %p199 = pneg %p198
      $region26: #{tpu_custom_call.1} parent=5 // pred_check_branch
        %201 = sbr.rel (%p199) target = $region28
      $region27: #{tpu_custom_call.1} parent=5 // pred_region
        _
      $region28: #{tpu_custom_call.1} parent=5 // pred_fallthru
        _
      %p202 = scmp.le.s32.totalorder 1, %s19
      %p203 = scmp.lt.s32.totalorder %s19, 17
      %p204 = pnand %p202, %p203
      %p205 = pneg %p204
      // Predicated region
      $region29: #{tpu_custom_call.1} parent=5 // pred_check
        _
      $region30: #{tpu_custom_call.1} parent=5 // pred_check_branch
        %207 = sbr.rel (%p204) target = $region32
      $region31: #{tpu_custom_call.1} parent=5 // pred_region
        %s208 = ssub.s32 %s19, 1
        // Predicated region
        $region33: #{tpu_custom_call.1} parent=31 // pred_check
          %p209 = pneg %p57
        $region34: #{tpu_custom_call.1} parent=31 // pred_check_branch
          %211 = sbr.rel (%p209) target = $region36
        $region35: #{tpu_custom_call.1} parent=31 // pred_region
          %212 = dma.done [#allocation5], 9216
        $region36: #{tpu_custom_call.1} parent=31 // pred_fallthru
          _
        // Predicated region
        $region37: #{tpu_custom_call.1} parent=31 // pred_check
          %p213 = pneg %p83
        $region38: #{tpu_custom_call.1} parent=31 // pred_check_branch
          %215 = sbr.rel (%p213) target = $region40
        $region39: #{tpu_custom_call.1} parent=31 // pred_region
          %216 = dma.done [#allocation8], 128
        $region40: #{tpu_custom_call.1} parent=31 // pred_fallthru
          _
        // Predicated region
        $region41: #{tpu_custom_call.1} parent=31 // pred_check
          %p217 = pneg %p109
        $region42: #{tpu_custom_call.1} parent=31 // pred_check_branch
          %219 = sbr.rel (%p217) target = $region44
        $region43: #{tpu_custom_call.1} parent=31 // pred_region
          %220 = dma.done [#allocation8], 2048
        $region44: #{tpu_custom_call.1} parent=31 // pred_fallthru
          _
        %p221 = pneg %p57
        %p222 = pneg %p54
        %p223 = pneg %p83
        %p224 = pneg %p80
        %p225 = pneg %p109
        %p226 = pneg %p106
        %p227 = pneg %p137
        %p228 = pneg %p134
        %s229 = sand.u32 %s124, 1
        %s230 = scalar_lea.sflag [#allocation6], %s229
        %s231 = sand.u32 %s124, 1
        %s232 = smul.addr %s231, 1024
        %s233 = scalar_lea.vmem [#allocation10], %s232
        %s234 = smul.u32 8, %s28
        %s235 = smul.u32 8, %s28
        %s236 = smul.u32 8, %s28
        %s237 = smul.u32 2, %s29
        %s238 = smul.u32 8, %s28
        %s239 = sadd.s32 %s29, %s28
        %s240 = sld [smem:[#allocation3 + %s239]]
        %p241 = scmp.eq.s32.totalorder %s240, 0
        // Predicated region
        $region45: #{tpu_custom_call.1} parent=31 // pred_check
          %p242 = pneg %p241
        $region46: #{tpu_custom_call.1} parent=31 // pred_check_branch
          %244 = sbr.rel (%p242) target = $region48
        $region47: #{tpu_custom_call.1} parent=31 // pred_region
          %245 = vst [vmem:[%s233] sm:$0xff] 0.0
          %246 = vst [vmem:[%s233 + $0x8] sm:$0xff] 0.0
          %247 = vst [vmem:[%s233 + $0x10] sm:$0xff] 0.0
          %248 = vst [vmem:[%s233 + $0x18] sm:$0xff] 0.0
          %249 = vst [vmem:[%s233 + $0x20] sm:$0xff] 0.0
          %250 = vst [vmem:[%s233 + $0x28] sm:$0xff] 0.0
          %251 = vst [vmem:[%s233 + $0x30] sm:$0xff] 0.0
          %252 = vst [vmem:[%s233 + $0x38] sm:$0xff] 0.0
          %253 = vst [vmem:[%s233 + $0x40] sm:$0xff] 0.0
          %254 = vst [vmem:[%s233 + $0x48] sm:$0xff] 0.0
          %255 = vst [vmem:[%s233 + $0x50] sm:$0xff] 0.0
          %256 = vst [vmem:[%s233 + $0x58] sm:$0xff] 0.0
          %257 = vst [vmem:[%s233 + $0x60] sm:$0xff] 0.0
          %258 = vst [vmem:[%s233 + $0x68] sm:$0xff] 0.0
          %259 = vst [vmem:[%s233 + $0x70] sm:$0xff] 0.0
          %260 = vst [vmem:[%s233 + $0x78] sm:$0xff] 0.0
          %261 = vst [vmem:[%s233 + $0x80] sm:$0xff] 0.0
          %262 = vst [vmem:[%s233 + $0x88] sm:$0xff] 0.0
          %263 = vst [vmem:[%s233 + $0x90] sm:$0xff] 0.0
          %264 = vst [vmem:[%s233 + $0x98] sm:$0xff] 0.0
          %265 = vst [vmem:[%s233 + $0xa0] sm:$0xff] 0.0
          %266 = vst [vmem:[%s233 + $0xa8] sm:$0xff] 0.0
          %267 = vst [vmem:[%s233 + $0xb0] sm:$0xff] 0.0
          %268 = vst [vmem:[%s233 + $0xb8] sm:$0xff] 0.0
          %269 = vst [vmem:[%s233 + $0xc0] sm:$0xff] 0.0
          %270 = vst [vmem:[%s233 + $0xc8] sm:$0xff] 0.0
          %271 = vst [vmem:[%s233 + $0xd0] sm:$0xff] 0.0
          %272 = vst [vmem:[%s233 + $0xd8] sm:$0xff] 0.0
          %273 = vst [vmem:[%s233 + $0xe0] sm:$0xff] 0.0
          %274 = vst [vmem:[%s233 + $0xe8] sm:$0xff] 0.0
          %275 = vst [vmem:[%s233 + $0xf0] sm:$0xff] 0.0
          %276 = vst [vmem:[%s233 + $0xf8] sm:$0xff] 0.0
          %277 = vst [vmem:[%s233 + $0x100] sm:$0xff] 0.0
          %278 = vst [vmem:[%s233 + $0x108] sm:$0xff] 0.0
          %279 = vst [vmem:[%s233 + $0x110] sm:$0xff] 0.0
          %280 = vst [vmem:[%s233 + $0x118] sm:$0xff] 0.0
          %281 = vst [vmem:[%s233 + $0x120] sm:$0xff] 0.0
          %282 = vst [vmem:[%s233 + $0x128] sm:$0xff] 0.0
          %283 = vst [vmem:[%s233 + $0x130] sm:$0xff] 0.0
          %284 = vst [vmem:[%s233 + $0x138] sm:$0xff] 0.0
          %285 = vst [vmem:[%s233 + $0x140] sm:$0xff] 0.0
          %286 = vst [vmem:[%s233 + $0x148] sm:$0xff] 0.0
          %287 = vst [vmem:[%s233 + $0x150] sm:$0xff] 0.0
          %288 = vst [vmem:[%s233 + $0x158] sm:$0xff] 0.0
          %289 = vst [vmem:[%s233 + $0x160] sm:$0xff] 0.0
          %290 = vst [vmem:[%s233 + $0x168] sm:$0xff] 0.0
          %291 = vst [vmem:[%s233 + $0x170] sm:$0xff] 0.0
          %292 = vst [vmem:[%s233 + $0x178] sm:$0xff] 0.0
          %293 = vst [vmem:[%s233 + $0x180] sm:$0xff] 0.0
          %294 = vst [vmem:[%s233 + $0x188] sm:$0xff] 0.0
          %295 = vst [vmem:[%s233 + $0x190] sm:$0xff] 0.0
          %296 = vst [vmem:[%s233 + $0x198] sm:$0xff] 0.0
          %297 = vst [vmem:[%s233 + $0x1a0] sm:$0xff] 0.0
          %298 = vst [vmem:[%s233 + $0x1a8] sm:$0xff] 0.0
          %299 = vst [vmem:[%s233 + $0x1b0] sm:$0xff] 0.0
          %300 = vst [vmem:[%s233 + $0x1b8] sm:$0xff] 0.0
          %301 = vst [vmem:[%s233 + $0x1c0] sm:$0xff] 0.0
          %302 = vst [vmem:[%s233 + $0x1c8] sm:$0xff] 0.0
          %303 = vst [vmem:[%s233 + $0x1d0] sm:$0xff] 0.0
          %304 = vst [vmem:[%s233 + $0x1d8] sm:$0xff] 0.0
          %305 = vst [vmem:[%s233 + $0x1e0] sm:$0xff] 0.0
          %306 = vst [vmem:[%s233 + $0x1e8] sm:$0xff] 0.0
          %307 = vst [vmem:[%s233 + $0x1f0] sm:$0xff] 0.0
          %308 = vst [vmem:[%s233 + $0x1f8] sm:$0xff] 0.0
          %309 = vst [vmem:[%s233 + $0x200] sm:$0xff] 0.0
          %310 = vst [vmem:[%s233 + $0x208] sm:$0xff] 0.0
          %311 = vst [vmem:[%s233 + $0x210] sm:$0xff] 0.0
          %312 = vst [vmem:[%s233 + $0x218] sm:$0xff] 0.0
          %313 = vst [vmem:[%s233 + $0x220] sm:$0xff] 0.0
          %314 = vst [vmem:[%s233 + $0x228] sm:$0xff] 0.0
          %315 = vst [vmem:[%s233 + $0x230] sm:$0xff] 0.0
          %316 = vst [vmem:[%s233 + $0x238] sm:$0xff] 0.0
          %317 = vst [vmem:[%s233 + $0x240] sm:$0xff] 0.0
          %318 = vst [vmem:[%s233 + $0x248] sm:$0xff] 0.0
          %319 = vst [vmem:[%s233 + $0x250] sm:$0xff] 0.0
          %320 = vst [vmem:[%s233 + $0x258] sm:$0xff] 0.0
          %321 = vst [vmem:[%s233 + $0x260] sm:$0xff] 0.0
          %322 = vst [vmem:[%s233 + $0x268] sm:$0xff] 0.0
          %323 = vst [vmem:[%s233 + $0x270] sm:$0xff] 0.0
          %324 = vst [vmem:[%s233 + $0x278] sm:$0xff] 0.0
          %325 = vst [vmem:[%s233 + $0x280] sm:$0xff] 0.0
          %326 = vst [vmem:[%s233 + $0x288] sm:$0xff] 0.0
          %327 = vst [vmem:[%s233 + $0x290] sm:$0xff] 0.0
          %328 = vst [vmem:[%s233 + $0x298] sm:$0xff] 0.0
          %329 = vst [vmem:[%s233 + $0x2a0] sm:$0xff] 0.0
          %330 = vst [vmem:[%s233 + $0x2a8] sm:$0xff] 0.0
          %331 = vst [vmem:[%s233 + $0x2b0] sm:$0xff] 0.0
          %332 = vst [vmem:[%s233 + $0x2b8] sm:$0xff] 0.0
          %333 = vst [vmem:[%s233 + $0x2c0] sm:$0xff] 0.0
          %334 = vst [vmem:[%s233 + $0x2c8] sm:$0xff] 0.0
          %335 = vst [vmem:[%s233 + $0x2d0] sm:$0xff] 0.0
          %336 = vst [vmem:[%s233 + $0x2d8] sm:$0xff] 0.0
          %337 = vst [vmem:[%s233 + $0x2e0] sm:$0xff] 0.0
          %338 = vst [vmem:[%s233 + $0x2e8] sm:$0xff] 0.0
          %339 = vst [vmem:[%s233 + $0x2f0] sm:$0xff] 0.0
          %340 = vst [vmem:[%s233 + $0x2f8] sm:$0xff] 0.0
          %341 = vst [vmem:[%s233 + $0x300] sm:$0xff] 0.0
          %342 = vst [vmem:[%s233 + $0x308] sm:$0xff] 0.0
          %343 = vst [vmem:[%s233 + $0x310] sm:$0xff] 0.0
          %344 = vst [vmem:[%s233 + $0x318] sm:$0xff] 0.0
          %345 = vst [vmem:[%s233 + $0x320] sm:$0xff] 0.0
          %346 = vst [vmem:[%s233 + $0x328] sm:$0xff] 0.0
          %347 = vst [vmem:[%s233 + $0x330] sm:$0xff] 0.0
          %348 = vst [vmem:[%s233 + $0x338] sm:$0xff] 0.0
          %349 = vst [vmem:[%s233 + $0x340] sm:$0xff] 0.0
          %350 = vst [vmem:[%s233 + $0x348] sm:$0xff] 0.0
          %351 = vst [vmem:[%s233 + $0x350] sm:$0xff] 0.0
          %352 = vst [vmem:[%s233 + $0x358] sm:$0xff] 0.0
          %353 = vst [vmem:[%s233 + $0x360] sm:$0xff] 0.0
          %354 = vst [vmem:[%s233 + $0x368] sm:$0xff] 0.0
          %355 = vst [vmem:[%s233 + $0x370] sm:$0xff] 0.0
          %356 = vst [vmem:[%s233 + $0x378] sm:$0xff] 0.0
          %357 = vst [vmem:[%s233 + $0x380] sm:$0xff] 0.0
          %358 = vst [vmem:[%s233 + $0x388] sm:$0xff] 0.0
          %359 = vst [vmem:[%s233 + $0x390] sm:$0xff] 0.0
          %360 = vst [vmem:[%s233 + $0x398] sm:$0xff] 0.0
          %361 = vst [vmem:[%s233 + $0x3a0] sm:$0xff] 0.0
          %362 = vst [vmem:[%s233 + $0x3a8] sm:$0xff] 0.0
          %363 = vst [vmem:[%s233 + $0x3b0] sm:$0xff] 0.0
          %364 = vst [vmem:[%s233 + $0x3b8] sm:$0xff] 0.0
          %365 = vst [vmem:[%s233 + $0x3c0] sm:$0xff] 0.0
          %366 = vst [vmem:[%s233 + $0x3c8] sm:$0xff] 0.0
          %367 = vst [vmem:[%s233 + $0x3d0] sm:$0xff] 0.0
          %368 = vst [vmem:[%s233 + $0x3d8] sm:$0xff] 0.0
          %369 = vst [vmem:[%s233 + $0x3e0] sm:$0xff] 0.0
          %370 = vst [vmem:[%s233 + $0x3e8] sm:$0xff] 0.0
          %371 = vst [vmem:[%s233 + $0x3f0] sm:$0xff] 0.0
          %372 = vst [vmem:[%s233 + $0x3f8] sm:$0xff] 0.0
        $region48: #{tpu_custom_call.1} parent=31 // pred_fallthru
          _
        %p373 = scmp.ne.s32.totalorder %s240, 0
        // Predicated region
        $region49: #{tpu_custom_call.1} parent=31 // pred_check
          %p374 = pneg %p373
        $region50: #{tpu_custom_call.1} parent=31 // pred_check_branch
          %376 = sbr.rel (%p374) target = $region52
        $region51: #{tpu_custom_call.1} parent=31 // pred_region
          %v377 = vld [vmem:[#allocation7] sm:$0xff]
          %v378 = vld [vmem:[#allocation9] sm:$0xff]
          %v379 = vld [vmem:[#allocation9 + $0x8] sm:$0xff]
          %v380 = vld [vmem:[#allocation9 + $0x10] sm:$0xff]
          %v381 = vld [vmem:[#allocation9 + $0x18] sm:$0xff]
          %v382 = vld [vmem:[#allocation9 + $0x20] sm:$0xff]
          %v383 = vld [vmem:[#allocation9 + $0x28] sm:$0xff]
          %v384 = vld [vmem:[#allocation9 + $0x30] sm:$0xff]
          %v385 = vld [vmem:[#allocation9 + $0x38] sm:$0xff]
          %v386 = vld [vmem:[#allocation9 + $0x40] sm:$0xff]
          %v387 = vld [vmem:[#allocation9 + $0x48] sm:$0xff]
          %v388 = vld [vmem:[#allocation9 + $0x50] sm:$0xff]
          %v389 = vld [vmem:[#allocation9 + $0x58] sm:$0xff]
          %v390 = vld [vmem:[#allocation9 + $0x60] sm:$0xff]
          %v391 = vld [vmem:[#allocation9 + $0x68] sm:$0xff]
          %v392 = vld [vmem:[#allocation9 + $0x70] sm:$0xff]
          %v393 = vld [vmem:[#allocation9 + $0x78] sm:$0xff]
          %vm394 = vcmp.eq.s32.totalorder %v378, 0
          %vm395 = vcmp.eq.s32.totalorder %v379, 0
          %vm396 = vcmp.eq.s32.totalorder %v380, 0
          %vm397 = vcmp.eq.s32.totalorder %v381, 0
          %vm398 = vcmp.eq.s32.totalorder %v382, 0
          %vm399 = vcmp.eq.s32.totalorder %v383, 0
          %vm400 = vcmp.eq.s32.totalorder %v384, 0
          %vm401 = vcmp.eq.s32.totalorder %v385, 0
          %vm402 = vcmp.eq.s32.totalorder %v386, 0
          %vm403 = vcmp.eq.s32.totalorder %v387, 0
          %vm404 = vcmp.eq.s32.totalorder %v388, 0
          %vm405 = vcmp.eq.s32.totalorder %v389, 0
          %vm406 = vcmp.eq.s32.totalorder %v390, 0
          %vm407 = vcmp.eq.s32.totalorder %v391, 0
          %vm408 = vcmp.eq.s32.totalorder %v392, 0
          %vm409 = vcmp.eq.s32.totalorder %v393, 0
          %vm410 = vcmp.eq.s32.totalorder %v378, 1
          %vm411 = vcmp.eq.s32.totalorder %v379, 1
          %vm412 = vcmp.eq.s32.totalorder %v380, 1
          %vm413 = vcmp.eq.s32.totalorder %v381, 1
          %vm414 = vcmp.eq.s32.totalorder %v382, 1
          %vm415 = vcmp.eq.s32.totalorder %v383, 1
          %vm416 = vcmp.eq.s32.totalorder %v384, 1
          %vm417 = vcmp.eq.s32.totalorder %v385, 1
          %vm418 = vcmp.eq.s32.totalorder %v386, 1
          %vm419 = vcmp.eq.s32.totalorder %v387, 1
          %vm420 = vcmp.eq.s32.totalorder %v388, 1
          %vm421 = vcmp.eq.s32.totalorder %v389, 1
          %vm422 = vcmp.eq.s32.totalorder %v390, 1
          %vm423 = vcmp.eq.s32.totalorder %v391, 1
          %vm424 = vcmp.eq.s32.totalorder %v392, 1
          %vm425 = vcmp.eq.s32.totalorder %v393, 1
          %vm426 = vcmp.eq.s32.totalorder %v378, 2
          %vm427 = vcmp.eq.s32.totalorder %v379, 2
          %vm428 = vcmp.eq.s32.totalorder %v380, 2
          %vm429 = vcmp.eq.s32.totalorder %v381, 2
          %vm430 = vcmp.eq.s32.totalorder %v382, 2
          %vm431 = vcmp.eq.s32.totalorder %v383, 2
          %vm432 = vcmp.eq.s32.totalorder %v384, 2
          %vm433 = vcmp.eq.s32.totalorder %v385, 2
          %vm434 = vcmp.eq.s32.totalorder %v386, 2
          %vm435 = vcmp.eq.s32.totalorder %v387, 2
          %vm436 = vcmp.eq.s32.totalorder %v388, 2
          %vm437 = vcmp.eq.s32.totalorder %v389, 2
          %vm438 = vcmp.eq.s32.totalorder %v390, 2
          %vm439 = vcmp.eq.s32.totalorder %v391, 2
          %vm440 = vcmp.eq.s32.totalorder %v392, 2
          %vm441 = vcmp.eq.s32.totalorder %v393, 2
          %s442 = sadd.s32 %s29, 4294967295
          %v443 = vstv %s442
          %v444 = vsub.s32 %v377, %v443
          %vm445 = vcmp.eq.s32.totalorder %v444, 0
          %v446 = vld [vmem:[#allocation4] sm:$0xff]
          %v447 = vld [vmem:[#allocation4 + $0x8] sm:$0xff]
          %v448 = vld [vmem:[#allocation4 + $0x10] sm:$0xff]
          %v449 = vld [vmem:[#allocation4 + $0x18] sm:$0xff]
          %v450 = vld [vmem:[#allocation4 + $0x20] sm:$0xff]
          %v451 = vld [vmem:[#allocation4 + $0x28] sm:$0xff]
          %v452 = vld [vmem:[#allocation4 + $0x30] sm:$0xff]
          %v453 = vld [vmem:[#allocation4 + $0x38] sm:$0xff]
          %v454 = vsel %vm445, 1, 0
          %v455 = vlaneseq
          %v456 = vshrl.u32 %v455, 7
          %v457 = vsub.s32 0, %v456
          %v458 = vrot.slane %v454, %v457
          %v459 = vlaneseq
          %v460 = vshrl.u32 %v459, 7
          %v461 = vsub.s32 1, %v460
          %v462 = vrot.slane %v454, %v461
          %v463 = vlaneseq
          %v464 = vshrl.u32 %v463, 7
          %v465 = vsub.s32 2, %v464
          %v466 = vrot.slane %v454, %v465
          %v467 = vlaneseq
          %v468 = vshrl.u32 %v467, 7
          %v469 = vsub.s32 3, %v468
          %v470 = vrot.slane %v454, %v469
          %v471 = vlaneseq
          %v472 = vshrl.u32 %v471, 7
          %v473 = vsub.s32 4, %v472
          %v474 = vrot.slane %v454, %v473
          %v475 = vlaneseq
          %v476 = vshrl.u32 %v475, 7
          %v477 = vsub.s32 5, %v476
          %v478 = vrot.slane %v454, %v477
          %v479 = vlaneseq
          %v480 = vshrl.u32 %v479, 7
          %v481 = vsub.s32 6, %v480
          %v482 = vrot.slane %v454, %v481
          %v483 = vlaneseq
          %v484 = vshrl.u32 %v483, 7
          %v485 = vsub.s32 7, %v484
          %v486 = vrot.slane %v454, %v485
          %vm487 = vcmp.eq.s32.totalorder %v458, 1
          %vm488 = vcmp.eq.s32.totalorder %v462, 1
          %vm489 = vcmp.eq.s32.totalorder %v466, 1
          %vm490 = vcmp.eq.s32.totalorder %v470, 1
          %vm491 = vcmp.eq.s32.totalorder %v474, 1
          %vm492 = vcmp.eq.s32.totalorder %v478, 1
          %vm493 = vcmp.eq.s32.totalorder %v482, 1
          %vm494 = vcmp.eq.s32.totalorder %v486, 1
          %v495 = vsel %vm487, %v446, 0.0
          %v496 = vsel %vm488, %v447, 0.0
          %v497 = vsel %vm489, %v448, 0.0
          %v498 = vsel %vm490, %v449, 0.0
          %v499 = vsel %vm491, %v450, 0.0
          %v500 = vsel %vm492, %v451, 0.0
          %v501 = vsel %vm493, %v452, 0.0
          %v502 = vsel %vm494, %v453, 0.0
          %vm503 = vcmp.eq.s32.totalorder %v444, 1
          %s504 = scalar_lea.vmem [#allocation4], 192
          %v505 = vld [vmem:[%s504] sm:$0xff]
          %v506 = vld [vmem:[%s504 + $0x8] sm:$0xff]
          %v507 = vld [vmem:[%s504 + $0x10] sm:$0xff]
          %v508 = vld [vmem:[%s504 + $0x18] sm:$0xff]
          %v509 = vld [vmem:[%s504 + $0x20] sm:$0xff]
          %v510 = vld [vmem:[%s504 + $0x28] sm:$0xff]
          %v511 = vld [vmem:[%s504 + $0x30] sm:$0xff]
          %v512 = vld [vmem:[%s504 + $0x38] sm:$0xff]
          %v513 = vsel %vm503, 1, 0
          %v514 = vlaneseq
          %v515 = vshrl.u32 %v514, 7
          %v516 = vsub.s32 0, %v515
          %v517 = vrot.slane %v513, %v516
          %v518 = vlaneseq
          %v519 = vshrl.u32 %v518, 7
          %v520 = vsub.s32 1, %v519
          %v521 = vrot.slane %v513, %v520
          %v522 = vlaneseq
          %v523 = vshrl.u32 %v522, 7
          %v524 = vsub.s32 2, %v523
          %v525 = vrot.slane %v513, %v524
          %v526 = vlaneseq
          %v527 = vshrl.u32 %v526, 7
          %v528 = vsub.s32 3, %v527
          %v529 = vrot.slane %v513, %v528
          %v530 = vlaneseq
          %v531 = vshrl.u32 %v530, 7
          %v532 = vsub.s32 4, %v531
          %v533 = vrot.slane %v513, %v532
          %v534 = vlaneseq
          %v535 = vshrl.u32 %v534, 7
          %v536 = vsub.s32 5, %v535
          %v537 = vrot.slane %v513, %v536
          %v538 = vlaneseq
          %v539 = vshrl.u32 %v538, 7
          %v540 = vsub.s32 6, %v539
          %v541 = vrot.slane %v513, %v540
          %v542 = vlaneseq
          %v543 = vshrl.u32 %v542, 7
          %v544 = vsub.s32 7, %v543
          %v545 = vrot.slane %v513, %v544
          %vm546 = vcmp.eq.s32.totalorder %v517, 1
          %vm547 = vcmp.eq.s32.totalorder %v521, 1
          %vm548 = vcmp.eq.s32.totalorder %v525, 1
          %vm549 = vcmp.eq.s32.totalorder %v529, 1
          %vm550 = vcmp.eq.s32.totalorder %v533, 1
          %vm551 = vcmp.eq.s32.totalorder %v537, 1
          %vm552 = vcmp.eq.s32.totalorder %v541, 1
          %vm553 = vcmp.eq.s32.totalorder %v545, 1
          %v554 = vsel %vm546, %v505, %v495
          %v555 = vsel %vm547, %v506, %v496
          %v556 = vsel %vm548, %v507, %v497
          %v557 = vsel %vm549, %v508, %v498
          %v558 = vsel %vm550, %v509, %v499
          %v559 = vsel %vm551, %v510, %v500
          %v560 = vsel %vm552, %v511, %v501
          %v561 = vsel %vm553, %v512, %v502
          %vm562 = vcmp.eq.s32.totalorder %v444, 2
          %s563 = scalar_lea.vmem [#allocation4], 384
          %v564 = vld [vmem:[%s563] sm:$0xff]
          %v565 = vld [vmem:[%s563 + $0x8] sm:$0xff]
          %v566 = vld [vmem:[%s563 + $0x10] sm:$0xff]
          %v567 = vld [vmem:[%s563 + $0x18] sm:$0xff]
          %v568 = vld [vmem:[%s563 + $0x20] sm:$0xff]
          %v569 = vld [vmem:[%s563 + $0x28] sm:$0xff]
          %v570 = vld [vmem:[%s563 + $0x30] sm:$0xff]
          %v571 = vld [vmem:[%s563 + $0x38] sm:$0xff]
          %v572 = vsel %vm562, 1, 0
          %v573 = vlaneseq
          %v574 = vshrl.u32 %v573, 7
          %v575 = vsub.s32 0, %v574
          %v576 = vrot.slane %v572, %v575
          %v577 = vlaneseq
          %v578 = vshrl.u32 %v577, 7
          %v579 = vsub.s32 1, %v578
          %v580 = vrot.slane %v572, %v579
          %v581 = vlaneseq
          %v582 = vshrl.u32 %v581, 7
          %v583 = vsub.s32 2, %v582
          %v584 = vrot.slane %v572, %v583
          %v585 = vlaneseq
          %v586 = vshrl.u32 %v585, 7
          %v587 = vsub.s32 3, %v586
          %v588 = vrot.slane %v572, %v587
          %v589 = vlaneseq
          %v590 = vshrl.u32 %v589, 7
          %v591 = vsub.s32 4, %v590
          %v592 = vrot.slane %v572, %v591
          %v593 = vlaneseq
          %v594 = vshrl.u32 %v593, 7
          %v595 = vsub.s32 5, %v594
          %v596 = vrot.slane %v572, %v595
          %v597 = vlaneseq
          %v598 = vshrl.u32 %v597, 7
          %v599 = vsub.s32 6, %v598
          %v600 = vrot.slane %v572, %v599
          %v601 = vlaneseq
          %v602 = vshrl.u32 %v601, 7
          %v603 = vsub.s32 7, %v602
          %v604 = vrot.slane %v572, %v603
          %vm605 = vcmp.eq.s32.totalorder %v576, 1
          %vm606 = vcmp.eq.s32.totalorder %v580, 1
          %vm607 = vcmp.eq.s32.totalorder %v584, 1
          %vm608 = vcmp.eq.s32.totalorder %v588, 1
          %vm609 = vcmp.eq.s32.totalorder %v592, 1
          %vm610 = vcmp.eq.s32.totalorder %v596, 1
          %vm611 = vcmp.eq.s32.totalorder %v600, 1
          %vm612 = vcmp.eq.s32.totalorder %v604, 1
          %v613 = vsel %vm605, %v564, %v554
          %v614 = vsel %vm606, %v565, %v555
          %v615 = vsel %vm607, %v566, %v556
          %v616 = vsel %vm608, %v567, %v557
          %v617 = vsel %vm609, %v568, %v558
          %v618 = vsel %vm610, %v569, %v559
          %v619 = vsel %vm611, %v570, %v560
          %v620 = vsel %vm612, %v571, %v561
          %v629 = vcombine.low %v613, %v614
          %v630 = vcombine.high %v613, %v614
          %v631 = vcombine.low %v615, %v616
          %v632 = vcombine.high %v615, %v616
          %v633 = vcombine.low %v617, %v618
          %v634 = vcombine.high %v617, %v618
          %v635 = vcombine.low %v619, %v620
          %v636 = vcombine.high %v619, %v620
          %v638 = vunpack.c.l.s4 1966171168
          %v639 = vunpack.c.0.s8 %v638
          %v640 = vlaneseq
          %v641 = vshrl.u32 %v640, 7
          %v642 = vsub.s32 %v639, %v641
          %v643 = vrot.slane %v629, %v642
          %v645 = vunpack.c.l.s4 1966171168
          %v646 = vunpack.c.0.s8 %v645
          %v647 = vlaneseq
          %v648 = vshrl.u32 %v647, 7
          %v649 = vsub.s32 %v646, %v648
          %v650 = vrot.slane %v630, %v649
          %v652 = vunpack.c.l.s4 1966171168
          %v653 = vunpack.c.0.s8 %v652
          %v654 = vlaneseq
          %v655 = vshrl.u32 %v654, 7
          %v656 = vsub.s32 %v653, %v655
          %v657 = vrot.slane %v631, %v656
          %v659 = vunpack.c.l.s4 1966171168
          %v660 = vunpack.c.0.s8 %v659
          %v661 = vlaneseq
          %v662 = vshrl.u32 %v661, 7
          %v663 = vsub.s32 %v660, %v662
          %v664 = vrot.slane %v632, %v663
          %v666 = vunpack.c.l.s4 1966171168
          %v667 = vunpack.c.0.s8 %v666
          %v668 = vlaneseq
          %v669 = vshrl.u32 %v668, 7
          %v670 = vsub.s32 %v667, %v669
          %v671 = vrot.slane %v633, %v670
          %v673 = vunpack.c.l.s4 1966171168
          %v674 = vunpack.c.0.s8 %v673
          %v675 = vlaneseq
          %v676 = vshrl.u32 %v675, 7
          %v677 = vsub.s32 %v674, %v676
          %v678 = vrot.slane %v634, %v677
          %v680 = vunpack.c.l.s4 1966171168
          %v681 = vunpack.c.0.s8 %v680
          %v682 = vlaneseq
          %v683 = vshrl.u32 %v682, 7
          %v684 = vsub.s32 %v681, %v683
          %v685 = vrot.slane %v635, %v684
          %v687 = vunpack.c.l.s4 1966171168
          %v688 = vunpack.c.0.s8 %v687
          %v689 = vlaneseq
          %v690 = vshrl.u32 %v689, 7
          %v691 = vsub.s32 %v688, %v690
          %v692 = vrot.slane %v636, %v691
          %v693 = vcombine.low %v643, %v657
          %v694 = vcombine.high %v643, %v657
          %v695 = vcombine.low %v650, %v664
          %v696 = vcombine.high %v650, %v664
          %v697 = vcombine.low %v671, %v685
          %v698 = vcombine.high %v671, %v685
          %v699 = vcombine.low %v678, %v692
          %v700 = vcombine.high %v678, %v692
          %v702 = vunpack.c.l.s4 1966171168
          %v703 = vunpack.c.0.s8 %v702
          %v704 = vlaneseq
          %v705 = vshrl.u32 %v704, 7
          %v706 = vsub.s32 %v703, %v705
          %v707 = vrot.slane %v693, %v706
          %v709 = vunpack.c.l.s4 1966171168
          %v710 = vunpack.c.0.s8 %v709
          %v711 = vlaneseq
          %v712 = vshrl.u32 %v711, 7
          %v713 = vsub.s32 %v710, %v712
          %v714 = vrot.slane %v695, %v713
          %v716 = vunpack.c.l.s4 1966171168
          %v717 = vunpack.c.0.s8 %v716
          %v718 = vlaneseq
          %v719 = vshrl.u32 %v718, 7
          %v720 = vsub.s32 %v717, %v719
          %v721 = vrot.slane %v694, %v720
          %v723 = vunpack.c.l.s4 1966171168
          %v724 = vunpack.c.0.s8 %v723
          %v725 = vlaneseq
          %v726 = vshrl.u32 %v725, 7
          %v727 = vsub.s32 %v724, %v726
          %v728 = vrot.slane %v696, %v727
          %v730 = vunpack.c.l.s4 1966171168
          %v731 = vunpack.c.0.s8 %v730
          %v732 = vlaneseq
          %v733 = vshrl.u32 %v732, 7
          %v734 = vsub.s32 %v731, %v733
          %v735 = vrot.slane %v697, %v734
          %v737 = vunpack.c.l.s4 1966171168
          %v738 = vunpack.c.0.s8 %v737
          %v739 = vlaneseq
          %v740 = vshrl.u32 %v739, 7
          %v741 = vsub.s32 %v738, %v740
          %v742 = vrot.slane %v699, %v741
          %v744 = vunpack.c.l.s4 1966171168
          %v745 = vunpack.c.0.s8 %v744
          %v746 = vlaneseq
          %v747 = vshrl.u32 %v746, 7
          %v748 = vsub.s32 %v745, %v747
          %v749 = vrot.slane %v698, %v748
          %v751 = vunpack.c.l.s4 1966171168
          %v752 = vunpack.c.0.s8 %v751
          %v753 = vlaneseq
          %v754 = vshrl.u32 %v753, 7
          %v755 = vsub.s32 %v752, %v754
          %v756 = vrot.slane %v700, %v755
          %v757 = vcombine.low %v707, %v735
          %v758 = vcombine.high %v707, %v735
          %v759 = vcombine.low %v714, %v742
          %v760 = vcombine.high %v714, %v742
          %v761 = vcombine.low %v721, %v749
          %v762 = vcombine.high %v721, %v749
          %v763 = vcombine.low %v728, %v756
          %v764 = vcombine.high %v728, %v756
          %v765 = vsel %vm394, 1, 0
          %v766 = vsel %vm395, 1, 0
          %v767 = vsel %vm396, 1, 0
          %v768 = vsel %vm397, 1, 0
          %v769 = vsel %vm398, 1, 0
          %v770 = vsel %vm399, 1, 0
          %v771 = vsel %vm400, 1, 0
          %v772 = vsel %vm401, 1, 0
          %v773 = vsel %vm402, 1, 0
          %v774 = vsel %vm403, 1, 0
          %v775 = vsel %vm404, 1, 0
          %v776 = vsel %vm405, 1, 0
          %v777 = vsel %vm406, 1, 0
          %v778 = vsel %vm407, 1, 0
          %v779 = vsel %vm408, 1, 0
          %v780 = vsel %vm409, 1, 0
          %vm781 = vcmp.eq.s32.totalorder %v765, 1
          %vm782 = vcmp.eq.s32.totalorder %v766, 1
          %vm783 = vcmp.eq.s32.totalorder %v767, 1
          %vm784 = vcmp.eq.s32.totalorder %v768, 1
          %vm785 = vcmp.eq.s32.totalorder %v769, 1
          %vm786 = vcmp.eq.s32.totalorder %v770, 1
          %vm787 = vcmp.eq.s32.totalorder %v771, 1
          %vm788 = vcmp.eq.s32.totalorder %v772, 1
          %vm789 = vcmp.eq.s32.totalorder %v773, 1
          %vm790 = vcmp.eq.s32.totalorder %v774, 1
          %vm791 = vcmp.eq.s32.totalorder %v775, 1
          %vm792 = vcmp.eq.s32.totalorder %v776, 1
          %vm793 = vcmp.eq.s32.totalorder %v777, 1
          %vm794 = vcmp.eq.s32.totalorder %v778, 1
          %vm795 = vcmp.eq.s32.totalorder %v779, 1
          %vm796 = vcmp.eq.s32.totalorder %v780, 1
          %v797 = vlaneseq
          %v798 = vshrl.u32 %v797, 7
          %v799 = vsub.s32 0, %v798
          %v800 = vrot.slane %v757, %v799
          %v801 = vlaneseq
          %v802 = vshrl.u32 %v801, 7
          %v803 = vsub.s32 1, %v802
          %v804 = vrot.slane %v757, %v803
          %v805 = vlaneseq
          %v806 = vshrl.u32 %v805, 7
          %v807 = vsub.s32 2, %v806
          %v808 = vrot.slane %v757, %v807
          %v809 = vlaneseq
          %v810 = vshrl.u32 %v809, 7
          %v811 = vsub.s32 3, %v810
          %v812 = vrot.slane %v757, %v811
          %v813 = vlaneseq
          %v814 = vshrl.u32 %v813, 7
          %v815 = vsub.s32 4, %v814
          %v816 = vrot.slane %v757, %v815
          %v817 = vlaneseq
          %v818 = vshrl.u32 %v817, 7
          %v819 = vsub.s32 5, %v818
          %v820 = vrot.slane %v757, %v819
          %v821 = vlaneseq
          %v822 = vshrl.u32 %v821, 7
          %v823 = vsub.s32 6, %v822
          %v824 = vrot.slane %v757, %v823
          %v825 = vlaneseq
          %v826 = vshrl.u32 %v825, 7
          %v827 = vsub.s32 7, %v826
          %v828 = vrot.slane %v757, %v827
          %v829 = vlaneseq
          %v830 = vshrl.u32 %v829, 7
          %v831 = vsub.s32 0, %v830
          %v832 = vrot.slane %v761, %v831
          %v833 = vlaneseq
          %v834 = vshrl.u32 %v833, 7
          %v835 = vsub.s32 1, %v834
          %v836 = vrot.slane %v761, %v835
          %v837 = vlaneseq
          %v838 = vshrl.u32 %v837, 7
          %v839 = vsub.s32 2, %v838
          %v840 = vrot.slane %v761, %v839
          %v841 = vlaneseq
          %v842 = vshrl.u32 %v841, 7
          %v843 = vsub.s32 3, %v842
          %v844 = vrot.slane %v761, %v843
          %v845 = vlaneseq
          %v846 = vshrl.u32 %v845, 7
          %v847 = vsub.s32 4, %v846
          %v848 = vrot.slane %v761, %v847
          %v849 = vlaneseq
          %v850 = vshrl.u32 %v849, 7
          %v851 = vsub.s32 5, %v850
          %v852 = vrot.slane %v761, %v851
          %v853 = vlaneseq
          %v854 = vshrl.u32 %v853, 7
          %v855 = vsub.s32 6, %v854
          %v856 = vrot.slane %v761, %v855
          %v857 = vlaneseq
          %v858 = vshrl.u32 %v857, 7
          %v859 = vsub.s32 7, %v858
          %v860 = vrot.slane %v761, %v859
          %v861 = vlaneseq
          %v862 = vshrl.u32 %v861, 7
          %v863 = vsub.s32 0, %v862
          %v864 = vrot.slane %v758, %v863
          %v865 = vlaneseq
          %v866 = vshrl.u32 %v865, 7
          %v867 = vsub.s32 1, %v866
          %v868 = vrot.slane %v758, %v867
          %v869 = vlaneseq
          %v870 = vshrl.u32 %v869, 7
          %v871 = vsub.s32 2, %v870
          %v872 = vrot.slane %v758, %v871
          %v873 = vlaneseq
          %v874 = vshrl.u32 %v873, 7
          %v875 = vsub.s32 3, %v874
          %v876 = vrot.slane %v758, %v875
          %v877 = vlaneseq
          %v878 = vshrl.u32 %v877, 7
          %v879 = vsub.s32 4, %v878
          %v880 = vrot.slane %v758, %v879
          %v881 = vlaneseq
          %v882 = vshrl.u32 %v881, 7
          %v883 = vsub.s32 5, %v882
          %v884 = vrot.slane %v758, %v883
          %v885 = vlaneseq
          %v886 = vshrl.u32 %v885, 7
          %v887 = vsub.s32 6, %v886
          %v888 = vrot.slane %v758, %v887
          %v889 = vlaneseq
          %v890 = vshrl.u32 %v889, 7
          %v891 = vsub.s32 7, %v890
          %v892 = vrot.slane %v758, %v891
          %v893 = vlaneseq
          %v894 = vshrl.u32 %v893, 7
          %v895 = vsub.s32 0, %v894
          %v896 = vrot.slane %v762, %v895
          %v897 = vlaneseq
          %v898 = vshrl.u32 %v897, 7
          %v899 = vsub.s32 1, %v898
          %v900 = vrot.slane %v762, %v899
          %v901 = vlaneseq
          %v902 = vshrl.u32 %v901, 7
          %v903 = vsub.s32 2, %v902
          %v904 = vrot.slane %v762, %v903
          %v905 = vlaneseq
          %v906 = vshrl.u32 %v905, 7
          %v907 = vsub.s32 3, %v906
          %v908 = vrot.slane %v762, %v907
          %v909 = vlaneseq
          %v910 = vshrl.u32 %v909, 7
          %v911 = vsub.s32 4, %v910
          %v912 = vrot.slane %v762, %v911
          %v913 = vlaneseq
          %v914 = vshrl.u32 %v913, 7
          %v915 = vsub.s32 5, %v914
          %v916 = vrot.slane %v762, %v915
          %v917 = vlaneseq
          %v918 = vshrl.u32 %v917, 7
          %v919 = vsub.s32 6, %v918
          %v920 = vrot.slane %v762, %v919
          %v921 = vlaneseq
          %v922 = vshrl.u32 %v921, 7
          %v923 = vsub.s32 7, %v922
          %v924 = vrot.slane %v762, %v923
          %v925 = vlaneseq
          %v926 = vshrl.u32 %v925, 7
          %v927 = vsub.s32 0, %v926
          %v928 = vrot.slane %v759, %v927
          %v929 = vlaneseq
          %v930 = vshrl.u32 %v929, 7
          %v931 = vsub.s32 1, %v930
          %v932 = vrot.slane %v759, %v931
          %v933 = vlaneseq
          %v934 = vshrl.u32 %v933, 7
          %v935 = vsub.s32 2, %v934
          %v936 = vrot.slane %v759, %v935
          %v937 = vlaneseq
          %v938 = vshrl.u32 %v937, 7
          %v939 = vsub.s32 3, %v938
          %v940 = vrot.slane %v759, %v939
          %v941 = vlaneseq
          %v942 = vshrl.u32 %v941, 7
          %v943 = vsub.s32 4, %v942
          %v944 = vrot.slane %v759, %v943
          %v945 = vlaneseq
          %v946 = vshrl.u32 %v945, 7
          %v947 = vsub.s32 5, %v946
          %v948 = vrot.slane %v759, %v947
          %v949 = vlaneseq
          %v950 = vshrl.u32 %v949, 7
          %v951 = vsub.s32 6, %v950
          %v952 = vrot.slane %v759, %v951
          %v953 = vlaneseq
          %v954 = vshrl.u32 %v953, 7
          %v955 = vsub.s32 7, %v954
          %v956 = vrot.slane %v759, %v955
          %v957 = vlaneseq
          %v958 = vshrl.u32 %v957, 7
          %v959 = vsub.s32 0, %v958
          %v960 = vrot.slane %v763, %v959
          %v961 = vlaneseq
          %v962 = vshrl.u32 %v961, 7
          %v963 = vsub.s32 1, %v962
          %v964 = vrot.slane %v763, %v963
          %v965 = vlaneseq
          %v966 = vshrl.u32 %v965, 7
          %v967 = vsub.s32 2, %v966
          %v968 = vrot.slane %v763, %v967
          %v969 = vlaneseq
          %v970 = vshrl.u32 %v969, 7
          %v971 = vsub.s32 3, %v970
          %v972 = vrot.slane %v763, %v971
          %v973 = vlaneseq
          %v974 = vshrl.u32 %v973, 7
          %v975 = vsub.s32 4, %v974
          %v976 = vrot.slane %v763, %v975
          %v977 = vlaneseq
          %v978 = vshrl.u32 %v977, 7
          %v979 = vsub.s32 5, %v978
          %v980 = vrot.slane %v763, %v979
          %v981 = vlaneseq
          %v982 = vshrl.u32 %v981, 7
          %v983 = vsub.s32 6, %v982
          %v984 = vrot.slane %v763, %v983
          %v985 = vlaneseq
          %v986 = vshrl.u32 %v985, 7
          %v987 = vsub.s32 7, %v986
          %v988 = vrot.slane %v763, %v987
          %v989 = vlaneseq
          %v990 = vshrl.u32 %v989, 7
          %v991 = vsub.s32 0, %v990
          %v992 = vrot.slane %v760, %v991
          %v993 = vlaneseq
          %v994 = vshrl.u32 %v993, 7
          %v995 = vsub.s32 1, %v994
          %v996 = vrot.slane %v760, %v995
          %v997 = vlaneseq
          %v998 = vshrl.u32 %v997, 7
          %v999 = vsub.s32 2, %v998
          %v1000 = vrot.slane %v760, %v999
          %v1001 = vlaneseq
          %v1002 = vshrl.u32 %v1001, 7
          %v1003 = vsub.s32 3, %v1002
          %v1004 = vrot.slane %v760, %v1003
          %v1005 = vlaneseq
          %v1006 = vshrl.u32 %v1005, 7
          %v1007 = vsub.s32 4, %v1006
          %v1008 = vrot.slane %v760, %v1007
          %v1009 = vlaneseq
          %v1010 = vshrl.u32 %v1009, 7
          %v1011 = vsub.s32 5, %v1010
          %v1012 = vrot.slane %v760, %v1011
          %v1013 = vlaneseq
          %v1014 = vshrl.u32 %v1013, 7
          %v1015 = vsub.s32 6, %v1014
          %v1016 = vrot.slane %v760, %v1015
          %v1017 = vlaneseq
          %v1018 = vshrl.u32 %v1017, 7
          %v1019 = vsub.s32 7, %v1018
          %v1020 = vrot.slane %v760, %v1019
          %v1021 = vlaneseq
          %v1022 = vshrl.u32 %v1021, 7
          %v1023 = vsub.s32 0, %v1022
          %v1024 = vrot.slane %v764, %v1023
          %v1025 = vlaneseq
          %v1026 = vshrl.u32 %v1025, 7
          %v1027 = vsub.s32 1, %v1026
          %v1028 = vrot.slane %v764, %v1027
          %v1029 = vlaneseq
          %v1030 = vshrl.u32 %v1029, 7
          %v1031 = vsub.s32 2, %v1030
          %v1032 = vrot.slane %v764, %v1031
          %v1033 = vlaneseq
          %v1034 = vshrl.u32 %v1033, 7
          %v1035 = vsub.s32 3, %v1034
          %v1036 = vrot.slane %v764, %v1035
          %v1037 = vlaneseq
          %v1038 = vshrl.u32 %v1037, 7
          %v1039 = vsub.s32 4, %v1038
          %v1040 = vrot.slane %v764, %v1039
          %v1041 = vlaneseq
          %v1042 = vshrl.u32 %v1041, 7
          %v1043 = vsub.s32 5, %v1042
          %v1044 = vrot.slane %v764, %v1043
          %v1045 = vlaneseq
          %v1046 = vshrl.u32 %v1045, 7
          %v1047 = vsub.s32 6, %v1046
          %v1048 = vrot.slane %v764, %v1047
          %v1049 = vlaneseq
          %v1050 = vshrl.u32 %v1049, 7
          %v1051 = vsub.s32 7, %v1050
          %v1052 = vrot.slane %v764, %v1051
          %v1117 = vsel %vm781, %v800, 0.0
          %v1118 = vsel %vm782, %v804, 0.0
          %v1119 = vsel %vm783, %v808, 0.0
          %v1120 = vsel %vm784, %v812, 0.0
          %v1121 = vsel %vm785, %v816, 0.0
          %v1122 = vsel %vm786, %v820, 0.0
          %v1123 = vsel %vm787, %v824, 0.0
          %v1124 = vsel %vm788, %v828, 0.0
          %v1125 = vsel %vm789, %v800, 0.0
          %v1126 = vsel %vm790, %v804, 0.0
          %v1127 = vsel %vm791, %v808, 0.0
          %v1128 = vsel %vm792, %v812, 0.0
          %v1129 = vsel %vm793, %v816, 0.0
          %v1130 = vsel %vm794, %v820, 0.0
          %v1131 = vsel %vm795, %v824, 0.0
          %v1132 = vsel %vm796, %v828, 0.0
          %v1133 = vsel %vm781, %v832, 0.0
          %v1134 = vsel %vm782, %v836, 0.0
          %v1135 = vsel %vm783, %v840, 0.0
          %v1136 = vsel %vm784, %v844, 0.0
          %v1137 = vsel %vm785, %v848, 0.0
          %v1138 = vsel %vm786, %v852, 0.0
          %v1139 = vsel %vm787, %v856, 0.0
          %v1140 = vsel %vm788, %v860, 0.0
          %v1141 = vsel %vm789, %v832, 0.0
          %v1142 = vsel %vm790, %v836, 0.0
          %v1143 = vsel %vm791, %v840, 0.0
          %v1144 = vsel %vm792, %v844, 0.0
          %v1145 = vsel %vm793, %v848, 0.0
          %v1146 = vsel %vm794, %v852, 0.0
          %v1147 = vsel %vm795, %v856, 0.0
          %v1148 = vsel %vm796, %v860, 0.0
          %v1149 = vsel %vm781, %v864, 0.0
          %v1150 = vsel %vm782, %v868, 0.0
          %v1151 = vsel %vm783, %v872, 0.0
          %v1152 = vsel %vm784, %v876, 0.0
          %v1153 = vsel %vm785, %v880, 0.0
          %v1154 = vsel %vm786, %v884, 0.0
          %v1155 = vsel %vm787, %v888, 0.0
          %v1156 = vsel %vm788, %v892, 0.0
          %v1157 = vsel %vm789, %v864, 0.0
          %v1158 = vsel %vm790, %v868, 0.0
          %v1159 = vsel %vm791, %v872, 0.0
          %v1160 = vsel %vm792, %v876, 0.0
          %v1161 = vsel %vm793, %v880, 0.0
          %v1162 = vsel %vm794, %v884, 0.0
          %v1163 = vsel %vm795, %v888, 0.0
          %v1164 = vsel %vm796, %v892, 0.0
          %v1165 = vsel %vm781, %v896, 0.0
          %v1166 = vsel %vm782, %v900, 0.0
          %v1167 = vsel %vm783, %v904, 0.0
          %v1168 = vsel %vm784, %v908, 0.0
          %v1169 = vsel %vm785, %v912, 0.0
          %v1170 = vsel %vm786, %v916, 0.0
          %v1171 = vsel %vm787, %v920, 0.0
          %v1172 = vsel %vm788, %v924, 0.0
          %v1173 = vsel %vm789, %v896, 0.0
          %v1174 = vsel %vm790, %v900, 0.0
          %v1175 = vsel %vm791, %v904, 0.0
          %v1176 = vsel %vm792, %v908, 0.0
          %v1177 = vsel %vm793, %v912, 0.0
          %v1178 = vsel %vm794, %v916, 0.0
          %v1179 = vsel %vm795, %v920, 0.0
          %v1180 = vsel %vm796, %v924, 0.0
          %v1181 = vsel %vm781, %v928, 0.0
          %v1182 = vsel %vm782, %v932, 0.0
          %v1183 = vsel %vm783, %v936, 0.0
          %v1184 = vsel %vm784, %v940, 0.0
          %v1185 = vsel %vm785, %v944, 0.0
          %v1186 = vsel %vm786, %v948, 0.0
          %v1187 = vsel %vm787, %v952, 0.0
          %v1188 = vsel %vm788, %v956, 0.0
          %v1189 = vsel %vm789, %v928, 0.0
          %v1190 = vsel %vm790, %v932, 0.0
          %v1191 = vsel %vm791, %v936, 0.0
          %v1192 = vsel %vm792, %v940, 0.0
          %v1193 = vsel %vm793, %v944, 0.0
          %v1194 = vsel %vm794, %v948, 0.0
          %v1195 = vsel %vm795, %v952, 0.0
          %v1196 = vsel %vm796, %v956, 0.0
          %v1197 = vsel %vm781, %v960, 0.0
          %v1198 = vsel %vm782, %v964, 0.0
          %v1199 = vsel %vm783, %v968, 0.0
          %v1200 = vsel %vm784, %v972, 0.0
          %v1201 = vsel %vm785, %v976, 0.0
          %v1202 = vsel %vm786, %v980, 0.0
          %v1203 = vsel %vm787, %v984, 0.0
          %v1204 = vsel %vm788, %v988, 0.0
          %v1205 = vsel %vm789, %v960, 0.0
          %v1206 = vsel %vm790, %v964, 0.0
          %v1207 = vsel %vm791, %v968, 0.0
          %v1208 = vsel %vm792, %v972, 0.0
          %v1209 = vsel %vm793, %v976, 0.0
          %v1210 = vsel %vm794, %v980, 0.0
          %v1211 = vsel %vm795, %v984, 0.0
          %v1212 = vsel %vm796, %v988, 0.0
          %v1213 = vsel %vm781, %v992, 0.0
          %v1214 = vsel %vm782, %v996, 0.0
          %v1215 = vsel %vm783, %v1000, 0.0
          %v1216 = vsel %vm784, %v1004, 0.0
          %v1217 = vsel %vm785, %v1008, 0.0
          %v1218 = vsel %vm786, %v1012, 0.0
          %v1219 = vsel %vm787, %v1016, 0.0
          %v1220 = vsel %vm788, %v1020, 0.0
          %v1221 = vsel %vm789, %v992, 0.0
          %v1222 = vsel %vm790, %v996, 0.0
          %v1223 = vsel %vm791, %v1000, 0.0
          %v1224 = vsel %vm792, %v1004, 0.0
          %v1225 = vsel %vm793, %v1008, 0.0
          %v1226 = vsel %vm794, %v1012, 0.0
          %v1227 = vsel %vm795, %v1016, 0.0
          %v1228 = vsel %vm796, %v1020, 0.0
          %v1229 = vsel %vm781, %v1024, 0.0
          %v1230 = vsel %vm782, %v1028, 0.0
          %v1231 = vsel %vm783, %v1032, 0.0
          %v1232 = vsel %vm784, %v1036, 0.0
          %v1233 = vsel %vm785, %v1040, 0.0
          %v1234 = vsel %vm786, %v1044, 0.0
          %v1235 = vsel %vm787, %v1048, 0.0
          %v1236 = vsel %vm788, %v1052, 0.0
          %v1237 = vsel %vm789, %v1024, 0.0
          %v1238 = vsel %vm790, %v1028, 0.0
          %v1239 = vsel %vm791, %v1032, 0.0
          %v1240 = vsel %vm792, %v1036, 0.0
          %v1241 = vsel %vm793, %v1040, 0.0
          %v1242 = vsel %vm794, %v1044, 0.0
          %v1243 = vsel %vm795, %v1048, 0.0
          %v1244 = vsel %vm796, %v1052, 0.0
          %s1245 = scalar_lea.vmem [#allocation4], 64
          %v1246 = vld [vmem:[%s1245] sm:$0xff]
          %v1247 = vld [vmem:[%s1245 + $0x8] sm:$0xff]
          %v1248 = vld [vmem:[%s1245 + $0x10] sm:$0xff]
          %v1249 = vld [vmem:[%s1245 + $0x18] sm:$0xff]
          %v1250 = vld [vmem:[%s1245 + $0x20] sm:$0xff]
          %v1251 = vld [vmem:[%s1245 + $0x28] sm:$0xff]
          %v1252 = vld [vmem:[%s1245 + $0x30] sm:$0xff]
          %v1253 = vld [vmem:[%s1245 + $0x38] sm:$0xff]
          %v1254 = vsel %vm487, %v1246, 0.0
          %v1255 = vsel %vm488, %v1247, 0.0
          %v1256 = vsel %vm489, %v1248, 0.0
          %v1257 = vsel %vm490, %v1249, 0.0
          %v1258 = vsel %vm491, %v1250, 0.0
          %v1259 = vsel %vm492, %v1251, 0.0
          %v1260 = vsel %vm493, %v1252, 0.0
          %v1261 = vsel %vm494, %v1253, 0.0
          %s1262 = scalar_lea.vmem [#allocation4], 256
          %v1263 = vld [vmem:[%s1262] sm:$0xff]
          %v1264 = vld [vmem:[%s1262 + $0x8] sm:$0xff]
          %v1265 = vld [vmem:[%s1262 + $0x10] sm:$0xff]
          %v1266 = vld [vmem:[%s1262 + $0x18] sm:$0xff]
          %v1267 = vld [vmem:[%s1262 + $0x20] sm:$0xff]
          %v1268 = vld [vmem:[%s1262 + $0x28] sm:$0xff]
          %v1269 = vld [vmem:[%s1262 + $0x30] sm:$0xff]
          %v1270 = vld [vmem:[%s1262 + $0x38] sm:$0xff]
          %v1271 = vsel %vm546, %v1263, %v1254
          %v1272 = vsel %vm547, %v1264, %v1255
          %v1273 = vsel %vm548, %v1265, %v1256
          %v1274 = vsel %vm549, %v1266, %v1257
          %v1275 = vsel %vm550, %v1267, %v1258
          %v1276 = vsel %vm551, %v1268, %v1259
          %v1277 = vsel %vm552, %v1269, %v1260
          %v1278 = vsel %vm553, %v1270, %v1261
          %s1279 = scalar_lea.vmem [#allocation4], 448
          %v1280 = vld [vmem:[%s1279] sm:$0xff]
          %v1281 = vld [vmem:[%s1279 + $0x8] sm:$0xff]
          %v1282 = vld [vmem:[%s1279 + $0x10] sm:$0xff]
          %v1283 = vld [vmem:[%s1279 + $0x18] sm:$0xff]
          %v1284 = vld [vmem:[%s1279 + $0x20] sm:$0xff]
          %v1285 = vld [vmem:[%s1279 + $0x28] sm:$0xff]
          %v1286 = vld [vmem:[%s1279 + $0x30] sm:$0xff]
          %v1287 = vld [vmem:[%s1279 + $0x38] sm:$0xff]
          %v1288 = vsel %vm605, %v1280, %v1271
          %v1289 = vsel %vm606, %v1281, %v1272
          %v1290 = vsel %vm607, %v1282, %v1273
          %v1291 = vsel %vm608, %v1283, %v1274
          %v1292 = vsel %vm609, %v1284, %v1275
          %v1293 = vsel %vm610, %v1285, %v1276
          %v1294 = vsel %vm611, %v1286, %v1277
          %v1295 = vsel %vm612, %v1287, %v1278
          %v1304 = vcombine.low %v1288, %v1289
          %v1305 = vcombine.high %v1288, %v1289
          %v1306 = vcombine.low %v1290, %v1291
          %v1307 = vcombine.high %v1290, %v1291
          %v1308 = vcombine.low %v1292, %v1293
          %v1309 = vcombine.high %v1292, %v1293
          %v1310 = vcombine.low %v1294, %v1295
          %v1311 = vcombine.high %v1294, %v1295
          %v1313 = vunpack.c.l.s4 1966171168
          %v1314 = vunpack.c.0.s8 %v1313
          %v1315 = vlaneseq
          %v1316 = vshrl.u32 %v1315, 7
          %v1317 = vsub.s32 %v1314, %v1316
          %v1318 = vrot.slane %v1304, %v1317
          %v1320 = vunpack.c.l.s4 1966171168
          %v1321 = vunpack.c.0.s8 %v1320
          %v1322 = vlaneseq
          %v1323 = vshrl.u32 %v1322, 7
          %v1324 = vsub.s32 %v1321, %v1323
          %v1325 = vrot.slane %v1305, %v1324
          %v1327 = vunpack.c.l.s4 1966171168
          %v1328 = vunpack.c.0.s8 %v1327
          %v1329 = vlaneseq
          %v1330 = vshrl.u32 %v1329, 7
          %v1331 = vsub.s32 %v1328, %v1330
          %v1332 = vrot.slane %v1306, %v1331
          %v1334 = vunpack.c.l.s4 1966171168
          %v1335 = vunpack.c.0.s8 %v1334
          %v1336 = vlaneseq
          %v1337 = vshrl.u32 %v1336, 7
          %v1338 = vsub.s32 %v1335, %v1337
          %v1339 = vrot.slane %v1307, %v1338
          %v1341 = vunpack.c.l.s4 1966171168
          %v1342 = vunpack.c.0.s8 %v1341
          %v1343 = vlaneseq
          %v1344 = vshrl.u32 %v1343, 7
          %v1345 = vsub.s32 %v1342, %v1344
          %v1346 = vrot.slane %v1308, %v1345
          %v1348 = vunpack.c.l.s4 1966171168
          %v1349 = vunpack.c.0.s8 %v1348
          %v1350 = vlaneseq
          %v1351 = vshrl.u32 %v1350, 7
          %v1352 = vsub.s32 %v1349, %v1351
          %v1353 = vrot.slane %v1309, %v1352
          %v1355 = vunpack.c.l.s4 1966171168
          %v1356 = vunpack.c.0.s8 %v1355
          %v1357 = vlaneseq
          %v1358 = vshrl.u32 %v1357, 7
          %v1359 = vsub.s32 %v1356, %v1358
          %v1360 = vrot.slane %v1310, %v1359
          %v1362 = vunpack.c.l.s4 1966171168
          %v1363 = vunpack.c.0.s8 %v1362
          %v1364 = vlaneseq
          %v1365 = vshrl.u32 %v1364, 7
          %v1366 = vsub.s32 %v1363, %v1365
          %v1367 = vrot.slane %v1311, %v1366
          %v1368 = vcombine.low %v1318, %v1332
          %v1369 = vcombine.high %v1318, %v1332
          %v1370 = vcombine.low %v1325, %v1339
          %v1371 = vcombine.high %v1325, %v1339
          %v1372 = vcombine.low %v1346, %v1360
          %v1373 = vcombine.high %v1346, %v1360
          %v1374 = vcombine.low %v1353, %v1367
          %v1375 = vcombine.high %v1353, %v1367
          %v1377 = vunpack.c.l.s4 1966171168
          %v1378 = vunpack.c.0.s8 %v1377
          %v1379 = vlaneseq
          %v1380 = vshrl.u32 %v1379, 7
          %v1381 = vsub.s32 %v1378, %v1380
          %v1382 = vrot.slane %v1368, %v1381
          %v1384 = vunpack.c.l.s4 1966171168
          %v1385 = vunpack.c.0.s8 %v1384
          %v1386 = vlaneseq
          %v1387 = vshrl.u32 %v1386, 7
          %v1388 = vsub.s32 %v1385, %v1387
          %v1389 = vrot.slane %v1370, %v1388
          %v1391 = vunpack.c.l.s4 1966171168
          %v1392 = vunpack.c.0.s8 %v1391
          %v1393 = vlaneseq
          %v1394 = vshrl.u32 %v1393, 7
          %v1395 = vsub.s32 %v1392, %v1394
          %v1396 = vrot.slane %v1369, %v1395
          %v1398 = vunpack.c.l.s4 1966171168
          %v1399 = vunpack.c.0.s8 %v1398
          %v1400 = vlaneseq
          %v1401 = vshrl.u32 %v1400, 7
          %v1402 = vsub.s32 %v1399, %v1401
          %v1403 = vrot.slane %v1371, %v1402
          %v1405 = vunpack.c.l.s4 1966171168
          %v1406 = vunpack.c.0.s8 %v1405
          %v1407 = vlaneseq
          %v1408 = vshrl.u32 %v1407, 7
          %v1409 = vsub.s32 %v1406, %v1408
          %v1410 = vrot.slane %v1372, %v1409
          %v1412 = vunpack.c.l.s4 1966171168
          %v1413 = vunpack.c.0.s8 %v1412
          %v1414 = vlaneseq
          %v1415 = vshrl.u32 %v1414, 7
          %v1416 = vsub.s32 %v1413, %v1415
          %v1417 = vrot.slane %v1374, %v1416
          %v1419 = vunpack.c.l.s4 1966171168
          %v1420 = vunpack.c.0.s8 %v1419
          %v1421 = vlaneseq
          %v1422 = vshrl.u32 %v1421, 7
          %v1423 = vsub.s32 %v1420, %v1422
          %v1424 = vrot.slane %v1373, %v1423
          %v1426 = vunpack.c.l.s4 1966171168
          %v1427 = vunpack.c.0.s8 %v1426
          %v1428 = vlaneseq
          %v1429 = vshrl.u32 %v1428, 7
          %v1430 = vsub.s32 %v1427, %v1429
          %v1431 = vrot.slane %v1375, %v1430
          %v1432 = vcombine.low %v1382, %v1410
          %v1433 = vcombine.high %v1382, %v1410
          %v1434 = vcombine.low %v1389, %v1417
          %v1435 = vcombine.high %v1389, %v1417
          %v1436 = vcombine.low %v1396, %v1424
          %v1437 = vcombine.high %v1396, %v1424
          %v1438 = vcombine.low %v1403, %v1431
          %v1439 = vcombine.high %v1403, %v1431
          %v1440 = vsel %vm410, 1, 0
          %v1441 = vsel %vm411, 1, 0
          %v1442 = vsel %vm412, 1, 0
          %v1443 = vsel %vm413, 1, 0
          %v1444 = vsel %vm414, 1, 0
          %v1445 = vsel %vm415, 1, 0
          %v1446 = vsel %vm416, 1, 0
          %v1447 = vsel %vm417, 1, 0
          %v1448 = vsel %vm418, 1, 0
          %v1449 = vsel %vm419, 1, 0
          %v1450 = vsel %vm420, 1, 0
          %v1451 = vsel %vm421, 1, 0
          %v1452 = vsel %vm422, 1, 0
          %v1453 = vsel %vm423, 1, 0
          %v1454 = vsel %vm424, 1, 0
          %v1455 = vsel %vm425, 1, 0
          %vm1456 = vcmp.eq.s32.totalorder %v1440, 1
          %vm1457 = vcmp.eq.s32.totalorder %v1441, 1
          %vm1458 = vcmp.eq.s32.totalorder %v1442, 1
          %vm1459 = vcmp.eq.s32.totalorder %v1443, 1
          %vm1460 = vcmp.eq.s32.totalorder %v1444, 1
          %vm1461 = vcmp.eq.s32.totalorder %v1445, 1
          %vm1462 = vcmp.eq.s32.totalorder %v1446, 1
          %vm1463 = vcmp.eq.s32.totalorder %v1447, 1
          %vm1464 = vcmp.eq.s32.totalorder %v1448, 1
          %vm1465 = vcmp.eq.s32.totalorder %v1449, 1
          %vm1466 = vcmp.eq.s32.totalorder %v1450, 1
          %vm1467 = vcmp.eq.s32.totalorder %v1451, 1
          %vm1468 = vcmp.eq.s32.totalorder %v1452, 1
          %vm1469 = vcmp.eq.s32.totalorder %v1453, 1
          %vm1470 = vcmp.eq.s32.totalorder %v1454, 1
          %vm1471 = vcmp.eq.s32.totalorder %v1455, 1
          %v1472 = vlaneseq
          %v1473 = vshrl.u32 %v1472, 7
          %v1474 = vsub.s32 0, %v1473
          %v1475 = vrot.slane %v1432, %v1474
          %v1476 = vlaneseq
          %v1477 = vshrl.u32 %v1476, 7
          %v1478 = vsub.s32 1, %v1477
          %v1479 = vrot.slane %v1432, %v1478
          %v1480 = vlaneseq
          %v1481 = vshrl.u32 %v1480, 7
          %v1482 = vsub.s32 2, %v1481
          %v1483 = vrot.slane %v1432, %v1482
          %v1484 = vlaneseq
          %v1485 = vshrl.u32 %v1484, 7
          %v1486 = vsub.s32 3, %v1485
          %v1487 = vrot.slane %v1432, %v1486
          %v1488 = vlaneseq
          %v1489 = vshrl.u32 %v1488, 7
          %v1490 = vsub.s32 4, %v1489
          %v1491 = vrot.slane %v1432, %v1490
          %v1492 = vlaneseq
          %v1493 = vshrl.u32 %v1492, 7
          %v1494 = vsub.s32 5, %v1493
          %v1495 = vrot.slane %v1432, %v1494
          %v1496 = vlaneseq
          %v1497 = vshrl.u32 %v1496, 7
          %v1498 = vsub.s32 6, %v1497
          %v1499 = vrot.slane %v1432, %v1498
          %v1500 = vlaneseq
          %v1501 = vshrl.u32 %v1500, 7
          %v1502 = vsub.s32 7, %v1501
          %v1503 = vrot.slane %v1432, %v1502
          %v1504 = vlaneseq
          %v1505 = vshrl.u32 %v1504, 7
          %v1506 = vsub.s32 0, %v1505
          %v1507 = vrot.slane %v1436, %v1506
          %v1508 = vlaneseq
          %v1509 = vshrl.u32 %v1508, 7
          %v1510 = vsub.s32 1, %v1509
          %v1511 = vrot.slane %v1436, %v1510
          %v1512 = vlaneseq
          %v1513 = vshrl.u32 %v1512, 7
          %v1514 = vsub.s32 2, %v1513
          %v1515 = vrot.slane %v1436, %v1514
          %v1516 = vlaneseq
          %v1517 = vshrl.u32 %v1516, 7
          %v1518 = vsub.s32 3, %v1517
          %v1519 = vrot.slane %v1436, %v1518
          %v1520 = vlaneseq
          %v1521 = vshrl.u32 %v1520, 7
          %v1522 = vsub.s32 4, %v1521
          %v1523 = vrot.slane %v1436, %v1522
          %v1524 = vlaneseq
          %v1525 = vshrl.u32 %v1524, 7
          %v1526 = vsub.s32 5, %v1525
          %v1527 = vrot.slane %v1436, %v1526
          %v1528 = vlaneseq
          %v1529 = vshrl.u32 %v1528, 7
          %v1530 = vsub.s32 6, %v1529
          %v1531 = vrot.slane %v1436, %v1530
          %v1532 = vlaneseq
          %v1533 = vshrl.u32 %v1532, 7
          %v1534 = vsub.s32 7, %v1533
          %v1535 = vrot.slane %v1436, %v1534
          %v1536 = vlaneseq
          %v1537 = vshrl.u32 %v1536, 7
          %v1538 = vsub.s32 0, %v1537
          %v1539 = vrot.slane %v1433, %v1538
          %v1540 = vlaneseq
          %v1541 = vshrl.u32 %v1540, 7
          %v1542 = vsub.s32 1, %v1541
          %v1543 = vrot.slane %v1433, %v1542
          %v1544 = vlaneseq
          %v1545 = vshrl.u32 %v1544, 7
          %v1546 = vsub.s32 2, %v1545
          %v1547 = vrot.slane %v1433, %v1546
          %v1548 = vlaneseq
          %v1549 = vshrl.u32 %v1548, 7
          %v1550 = vsub.s32 3, %v1549
          %v1551 = vrot.slane %v1433, %v1550
          %v1552 = vlaneseq
          %v1553 = vshrl.u32 %v1552, 7
          %v1554 = vsub.s32 4, %v1553
          %v1555 = vrot.slane %v1433, %v1554
          %v1556 = vlaneseq
          %v1557 = vshrl.u32 %v1556, 7
          %v1558 = vsub.s32 5, %v1557
          %v1559 = vrot.slane %v1433, %v1558
          %v1560 = vlaneseq
          %v1561 = vshrl.u32 %v1560, 7
          %v1562 = vsub.s32 6, %v1561
          %v1563 = vrot.slane %v1433, %v1562
          %v1564 = vlaneseq
          %v1565 = vshrl.u32 %v1564, 7
          %v1566 = vsub.s32 7, %v1565
          %v1567 = vrot.slane %v1433, %v1566
          %v1568 = vlaneseq
          %v1569 = vshrl.u32 %v1568, 7
          %v1570 = vsub.s32 0, %v1569
          %v1571 = vrot.slane %v1437, %v1570
          %v1572 = vlaneseq
          %v1573 = vshrl.u32 %v1572, 7
          %v1574 = vsub.s32 1, %v1573
          %v1575 = vrot.slane %v1437, %v1574
          %v1576 = vlaneseq
          %v1577 = vshrl.u32 %v1576, 7
          %v1578 = vsub.s32 2, %v1577
          %v1579 = vrot.slane %v1437, %v1578
          %v1580 = vlaneseq
          %v1581 = vshrl.u32 %v1580, 7
          %v1582 = vsub.s32 3, %v1581
          %v1583 = vrot.slane %v1437, %v1582
          %v1584 = vlaneseq
          %v1585 = vshrl.u32 %v1584, 7
          %v1586 = vsub.s32 4, %v1585
          %v1587 = vrot.slane %v1437, %v1586
          %v1588 = vlaneseq
          %v1589 = vshrl.u32 %v1588, 7
          %v1590 = vsub.s32 5, %v1589
          %v1591 = vrot.slane %v1437, %v1590
          %v1592 = vlaneseq
          %v1593 = vshrl.u32 %v1592, 7
          %v1594 = vsub.s32 6, %v1593
          %v1595 = vrot.slane %v1437, %v1594
          %v1596 = vlaneseq
          %v1597 = vshrl.u32 %v1596, 7
          %v1598 = vsub.s32 7, %v1597
          %v1599 = vrot.slane %v1437, %v1598
          %v1600 = vlaneseq
          %v1601 = vshrl.u32 %v1600, 7
          %v1602 = vsub.s32 0, %v1601
          %v1603 = vrot.slane %v1434, %v1602
          %v1604 = vlaneseq
          %v1605 = vshrl.u32 %v1604, 7
          %v1606 = vsub.s32 1, %v1605
          %v1607 = vrot.slane %v1434, %v1606
          %v1608 = vlaneseq
          %v1609 = vshrl.u32 %v1608, 7
          %v1610 = vsub.s32 2, %v1609
          %v1611 = vrot.slane %v1434, %v1610
          %v1612 = vlaneseq
          %v1613 = vshrl.u32 %v1612, 7
          %v1614 = vsub.s32 3, %v1613
          %v1615 = vrot.slane %v1434, %v1614
          %v1616 = vlaneseq
          %v1617 = vshrl.u32 %v1616, 7
          %v1618 = vsub.s32 4, %v1617
          %v1619 = vrot.slane %v1434, %v1618
          %v1620 = vlaneseq
          %v1621 = vshrl.u32 %v1620, 7
          %v1622 = vsub.s32 5, %v1621
          %v1623 = vrot.slane %v1434, %v1622
          %v1624 = vlaneseq
          %v1625 = vshrl.u32 %v1624, 7
          %v1626 = vsub.s32 6, %v1625
          %v1627 = vrot.slane %v1434, %v1626
          %v1628 = vlaneseq
          %v1629 = vshrl.u32 %v1628, 7
          %v1630 = vsub.s32 7, %v1629
          %v1631 = vrot.slane %v1434, %v1630
          %v1632 = vlaneseq
          %v1633 = vshrl.u32 %v1632, 7
          %v1634 = vsub.s32 0, %v1633
          %v1635 = vrot.slane %v1438, %v1634
          %v1636 = vlaneseq
          %v1637 = vshrl.u32 %v1636, 7
          %v1638 = vsub.s32 1, %v1637
          %v1639 = vrot.slane %v1438, %v1638
          %v1640 = vlaneseq
          %v1641 = vshrl.u32 %v1640, 7
          %v1642 = vsub.s32 2, %v1641
          %v1643 = vrot.slane %v1438, %v1642
          %v1644 = vlaneseq
          %v1645 = vshrl.u32 %v1644, 7
          %v1646 = vsub.s32 3, %v1645
          %v1647 = vrot.slane %v1438, %v1646
          %v1648 = vlaneseq
          %v1649 = vshrl.u32 %v1648, 7
          %v1650 = vsub.s32 4, %v1649
          %v1651 = vrot.slane %v1438, %v1650
          %v1652 = vlaneseq
          %v1653 = vshrl.u32 %v1652, 7
          %v1654 = vsub.s32 5, %v1653
          %v1655 = vrot.slane %v1438, %v1654
          %v1656 = vlaneseq
          %v1657 = vshrl.u32 %v1656, 7
          %v1658 = vsub.s32 6, %v1657
          %v1659 = vrot.slane %v1438, %v1658
          %v1660 = vlaneseq
          %v1661 = vshrl.u32 %v1660, 7
          %v1662 = vsub.s32 7, %v1661
          %v1663 = vrot.slane %v1438, %v1662
          %v1664 = vlaneseq
          %v1665 = vshrl.u32 %v1664, 7
          %v1666 = vsub.s32 0, %v1665
          %v1667 = vrot.slane %v1435, %v1666
          %v1668 = vlaneseq
          %v1669 = vshrl.u32 %v1668, 7
          %v1670 = vsub.s32 1, %v1669
          %v1671 = vrot.slane %v1435, %v1670
          %v1672 = vlaneseq
          %v1673 = vshrl.u32 %v1672, 7
          %v1674 = vsub.s32 2, %v1673
          %v1675 = vrot.slane %v1435, %v1674
          %v1676 = vlaneseq
          %v1677 = vshrl.u32 %v1676, 7
          %v1678 = vsub.s32 3, %v1677
          %v1679 = vrot.slane %v1435, %v1678
          %v1680 = vlaneseq
          %v1681 = vshrl.u32 %v1680, 7
          %v1682 = vsub.s32 4, %v1681
          %v1683 = vrot.slane %v1435, %v1682
          %v1684 = vlaneseq
          %v1685 = vshrl.u32 %v1684, 7
          %v1686 = vsub.s32 5, %v1685
          %v1687 = vrot.slane %v1435, %v1686
          %v1688 = vlaneseq
          %v1689 = vshrl.u32 %v1688, 7
          %v1690 = vsub.s32 6, %v1689
          %v1691 = vrot.slane %v1435, %v1690
          %v1692 = vlaneseq
          %v1693 = vshrl.u32 %v1692, 7
          %v1694 = vsub.s32 7, %v1693
          %v1695 = vrot.slane %v1435, %v1694
          %v1696 = vlaneseq
          %v1697 = vshrl.u32 %v1696, 7
          %v1698 = vsub.s32 0, %v1697
          %v1699 = vrot.slane %v1439, %v1698
          %v1700 = vlaneseq
          %v1701 = vshrl.u32 %v1700, 7
          %v1702 = vsub.s32 1, %v1701
          %v1703 = vrot.slane %v1439, %v1702
          %v1704 = vlaneseq
          %v1705 = vshrl.u32 %v1704, 7
          %v1706 = vsub.s32 2, %v1705
          %v1707 = vrot.slane %v1439, %v1706
          %v1708 = vlaneseq
          %v1709 = vshrl.u32 %v1708, 7
          %v1710 = vsub.s32 3, %v1709
          %v1711 = vrot.slane %v1439, %v1710
          %v1712 = vlaneseq
          %v1713 = vshrl.u32 %v1712, 7
          %v1714 = vsub.s32 4, %v1713
          %v1715 = vrot.slane %v1439, %v1714
          %v1716 = vlaneseq
          %v1717 = vshrl.u32 %v1716, 7
          %v1718 = vsub.s32 5, %v1717
          %v1719 = vrot.slane %v1439, %v1718
          %v1720 = vlaneseq
          %v1721 = vshrl.u32 %v1720, 7
          %v1722 = vsub.s32 6, %v1721
          %v1723 = vrot.slane %v1439, %v1722
          %v1724 = vlaneseq
          %v1725 = vshrl.u32 %v1724, 7
          %v1726 = vsub.s32 7, %v1725
          %v1727 = vrot.slane %v1439, %v1726
          %v1792 = vsel %vm1456, %v1475, %v1117
          %v1793 = vsel %vm1457, %v1479, %v1118
          %v1794 = vsel %vm1458, %v1483, %v1119
          %v1795 = vsel %vm1459, %v1487, %v1120
          %v1796 = vsel %vm1460, %v1491, %v1121
          %v1797 = vsel %vm1461, %v1495, %v1122
          %v1798 = vsel %vm1462, %v1499, %v1123
          %v1799 = vsel %vm1463, %v1503, %v1124
          %v1800 = vsel %vm1464, %v1475, %v1125
          %v1801 = vsel %vm1465, %v1479, %v1126
          %v1802 = vsel %vm1466, %v1483, %v1127
          %v1803 = vsel %vm1467, %v1487, %v1128
          %v1804 = vsel %vm1468, %v1491, %v1129
          %v1805 = vsel %vm1469, %v1495, %v1130
          %v1806 = vsel %vm1470, %v1499, %v1131
          %v1807 = vsel %vm1471, %v1503, %v1132
          %v1808 = vsel %vm1456, %v1507, %v1133
          %v1809 = vsel %vm1457, %v1511, %v1134
          %v1810 = vsel %vm1458, %v1515, %v1135
          %v1811 = vsel %vm1459, %v1519, %v1136
          %v1812 = vsel %vm1460, %v1523, %v1137
          %v1813 = vsel %vm1461, %v1527, %v1138
          %v1814 = vsel %vm1462, %v1531, %v1139
          %v1815 = vsel %vm1463, %v1535, %v1140
          %v1816 = vsel %vm1464, %v1507, %v1141
          %v1817 = vsel %vm1465, %v1511, %v1142
          %v1818 = vsel %vm1466, %v1515, %v1143
          %v1819 = vsel %vm1467, %v1519, %v1144
          %v1820 = vsel %vm1468, %v1523, %v1145
          %v1821 = vsel %vm1469, %v1527, %v1146
          %v1822 = vsel %vm1470, %v1531, %v1147
          %v1823 = vsel %vm1471, %v1535, %v1148
          %v1824 = vsel %vm1456, %v1539, %v1149
          %v1825 = vsel %vm1457, %v1543, %v1150
          %v1826 = vsel %vm1458, %v1547, %v1151
          %v1827 = vsel %vm1459, %v1551, %v1152
          %v1828 = vsel %vm1460, %v1555, %v1153
          %v1829 = vsel %vm1461, %v1559, %v1154
          %v1830 = vsel %vm1462, %v1563, %v1155
          %v1831 = vsel %vm1463, %v1567, %v1156
          %v1832 = vsel %vm1464, %v1539, %v1157
          %v1833 = vsel %vm1465, %v1543, %v1158
          %v1834 = vsel %vm1466, %v1547, %v1159
          %v1835 = vsel %vm1467, %v1551, %v1160
          %v1836 = vsel %vm1468, %v1555, %v1161
          %v1837 = vsel %vm1469, %v1559, %v1162
          %v1838 = vsel %vm1470, %v1563, %v1163
          %v1839 = vsel %vm1471, %v1567, %v1164
          %v1840 = vsel %vm1456, %v1571, %v1165
          %v1841 = vsel %vm1457, %v1575, %v1166
          %v1842 = vsel %vm1458, %v1579, %v1167
          %v1843 = vsel %vm1459, %v1583, %v1168
          %v1844 = vsel %vm1460, %v1587, %v1169
          %v1845 = vsel %vm1461, %v1591, %v1170
          %v1846 = vsel %vm1462, %v1595, %v1171
          %v1847 = vsel %vm1463, %v1599, %v1172
          %v1848 = vsel %vm1464, %v1571, %v1173
          %v1849 = vsel %vm1465, %v1575, %v1174
          %v1850 = vsel %vm1466, %v1579, %v1175
          %v1851 = vsel %vm1467, %v1583, %v1176
          %v1852 = vsel %vm1468, %v1587, %v1177
          %v1853 = vsel %vm1469, %v1591, %v1178
          %v1854 = vsel %vm1470, %v1595, %v1179
          %v1855 = vsel %vm1471, %v1599, %v1180
          %v1856 = vsel %vm1456, %v1603, %v1181
          %v1857 = vsel %vm1457, %v1607, %v1182
          %v1858 = vsel %vm1458, %v1611, %v1183
          %v1859 = vsel %vm1459, %v1615, %v1184
          %v1860 = vsel %vm1460, %v1619, %v1185
          %v1861 = vsel %vm1461, %v1623, %v1186
          %v1862 = vsel %vm1462, %v1627, %v1187
          %v1863 = vsel %vm1463, %v1631, %v1188
          %v1864 = vsel %vm1464, %v1603, %v1189
          %v1865 = vsel %vm1465, %v1607, %v1190
          %v1866 = vsel %vm1466, %v1611, %v1191
          %v1867 = vsel %vm1467, %v1615, %v1192
          %v1868 = vsel %vm1468, %v1619, %v1193
          %v1869 = vsel %vm1469, %v1623, %v1194
          %v1870 = vsel %vm1470, %v1627, %v1195
          %v1871 = vsel %vm1471, %v1631, %v1196
          %v1872 = vsel %vm1456, %v1635, %v1197
          %v1873 = vsel %vm1457, %v1639, %v1198
          %v1874 = vsel %vm1458, %v1643, %v1199
          %v1875 = vsel %vm1459, %v1647, %v1200
          %v1876 = vsel %vm1460, %v1651, %v1201
          %v1877 = vsel %vm1461, %v1655, %v1202
          %v1878 = vsel %vm1462, %v1659, %v1203
          %v1879 = vsel %vm1463, %v1663, %v1204
          %v1880 = vsel %vm1464, %v1635, %v1205
          %v1881 = vsel %vm1465, %v1639, %v1206
          %v1882 = vsel %vm1466, %v1643, %v1207
          %v1883 = vsel %vm1467, %v1647, %v1208
          %v1884 = vsel %vm1468, %v1651, %v1209
          %v1885 = vsel %vm1469, %v1655, %v1210
          %v1886 = vsel %vm1470, %v1659, %v1211
          %v1887 = vsel %vm1471, %v1663, %v1212
          %v1888 = vsel %vm1456, %v1667, %v1213
          %v1889 = vsel %vm1457, %v1671, %v1214
          %v1890 = vsel %vm1458, %v1675, %v1215
          %v1891 = vsel %vm1459, %v1679, %v1216
          %v1892 = vsel %vm1460, %v1683, %v1217
          %v1893 = vsel %vm1461, %v1687, %v1218
          %v1894 = vsel %vm1462, %v1691, %v1219
          %v1895 = vsel %vm1463, %v1695, %v1220
          %v1896 = vsel %vm1464, %v1667, %v1221
          %v1897 = vsel %vm1465, %v1671, %v1222
          %v1898 = vsel %vm1466, %v1675, %v1223
          %v1899 = vsel %vm1467, %v1679, %v1224
          %v1900 = vsel %vm1468, %v1683, %v1225
          %v1901 = vsel %vm1469, %v1687, %v1226
          %v1902 = vsel %vm1470, %v1691, %v1227
          %v1903 = vsel %vm1471, %v1695, %v1228
          %v1904 = vsel %vm1456, %v1699, %v1229
          %v1905 = vsel %vm1457, %v1703, %v1230
          %v1906 = vsel %vm1458, %v1707, %v1231
          %v1907 = vsel %vm1459, %v1711, %v1232
          %v1908 = vsel %vm1460, %v1715, %v1233
          %v1909 = vsel %vm1461, %v1719, %v1234
          %v1910 = vsel %vm1462, %v1723, %v1235
          %v1911 = vsel %vm1463, %v1727, %v1236
          %v1912 = vsel %vm1464, %v1699, %v1237
          %v1913 = vsel %vm1465, %v1703, %v1238
          %v1914 = vsel %vm1466, %v1707, %v1239
          %v1915 = vsel %vm1467, %v1711, %v1240
          %v1916 = vsel %vm1468, %v1715, %v1241
          %v1917 = vsel %vm1469, %v1719, %v1242
          %v1918 = vsel %vm1470, %v1723, %v1243
          %v1919 = vsel %vm1471, %v1727, %v1244
          %s1920 = scalar_lea.vmem [#allocation4], 128
          %v1921 = vld [vmem:[%s1920] sm:$0xff]
          %v1922 = vld [vmem:[%s1920 + $0x8] sm:$0xff]
          %v1923 = vld [vmem:[%s1920 + $0x10] sm:$0xff]
          %v1924 = vld [vmem:[%s1920 + $0x18] sm:$0xff]
          %v1925 = vld [vmem:[%s1920 + $0x20] sm:$0xff]
          %v1926 = vld [vmem:[%s1920 + $0x28] sm:$0xff]
          %v1927 = vld [vmem:[%s1920 + $0x30] sm:$0xff]
          %v1928 = vld [vmem:[%s1920 + $0x38] sm:$0xff]
          %v1929 = vsel %vm487, %v1921, 0.0
          %v1930 = vsel %vm488, %v1922, 0.0
          %v1931 = vsel %vm489, %v1923, 0.0
          %v1932 = vsel %vm490, %v1924, 0.0
          %v1933 = vsel %vm491, %v1925, 0.0
          %v1934 = vsel %vm492, %v1926, 0.0
          %v1935 = vsel %vm493, %v1927, 0.0
          %v1936 = vsel %vm494, %v1928, 0.0
          %s1937 = scalar_lea.vmem [#allocation4], 320
          %v1938 = vld [vmem:[%s1937] sm:$0xff]
          %v1939 = vld [vmem:[%s1937 + $0x8] sm:$0xff]
          %v1940 = vld [vmem:[%s1937 + $0x10] sm:$0xff]
          %v1941 = vld [vmem:[%s1937 + $0x18] sm:$0xff]
          %v1942 = vld [vmem:[%s1937 + $0x20] sm:$0xff]
          %v1943 = vld [vmem:[%s1937 + $0x28] sm:$0xff]
          %v1944 = vld [vmem:[%s1937 + $0x30] sm:$0xff]
          %v1945 = vld [vmem:[%s1937 + $0x38] sm:$0xff]
          %v1946 = vsel %vm546, %v1938, %v1929
          %v1947 = vsel %vm547, %v1939, %v1930
          %v1948 = vsel %vm548, %v1940, %v1931
          %v1949 = vsel %vm549, %v1941, %v1932
          %v1950 = vsel %vm550, %v1942, %v1933
          %v1951 = vsel %vm551, %v1943, %v1934
          %v1952 = vsel %vm552, %v1944, %v1935
          %v1953 = vsel %vm553, %v1945, %v1936
          %s1954 = scalar_lea.vmem [#allocation4], 512
          %v1955 = vld [vmem:[%s1954] sm:$0xff]
          %v1956 = vld [vmem:[%s1954 + $0x8] sm:$0xff]
          %v1957 = vld [vmem:[%s1954 + $0x10] sm:$0xff]
          %v1958 = vld [vmem:[%s1954 + $0x18] sm:$0xff]
          %v1959 = vld [vmem:[%s1954 + $0x20] sm:$0xff]
          %v1960 = vld [vmem:[%s1954 + $0x28] sm:$0xff]
          %v1961 = vld [vmem:[%s1954 + $0x30] sm:$0xff]
          %v1962 = vld [vmem:[%s1954 + $0x38] sm:$0xff]
          %v1963 = vsel %vm605, %v1955, %v1946
          %v1964 = vsel %vm606, %v1956, %v1947
          %v1965 = vsel %vm607, %v1957, %v1948
          %v1966 = vsel %vm608, %v1958, %v1949
          %v1967 = vsel %vm609, %v1959, %v1950
          %v1968 = vsel %vm610, %v1960, %v1951
          %v1969 = vsel %vm611, %v1961, %v1952
          %v1970 = vsel %vm612, %v1962, %v1953
          %v1979 = vcombine.low %v1963, %v1964
          %v1980 = vcombine.high %v1963, %v1964
          %v1981 = vcombine.low %v1965, %v1966
          %v1982 = vcombine.high %v1965, %v1966
          %v1983 = vcombine.low %v1967, %v1968
          %v1984 = vcombine.high %v1967, %v1968
          %v1985 = vcombine.low %v1969, %v1970
          %v1986 = vcombine.high %v1969, %v1970
          %v1988 = vunpack.c.l.s4 1966171168
          %v1989 = vunpack.c.0.s8 %v1988
          %v1990 = vlaneseq
          %v1991 = vshrl.u32 %v1990, 7
          %v1992 = vsub.s32 %v1989, %v1991
          %v1993 = vrot.slane %v1979, %v1992
          %v1995 = vunpack.c.l.s4 1966171168
          %v1996 = vunpack.c.0.s8 %v1995
          %v1997 = vlaneseq
          %v1998 = vshrl.u32 %v1997, 7
          %v1999 = vsub.s32 %v1996, %v1998
          %v2000 = vrot.slane %v1980, %v1999
          %v2002 = vunpack.c.l.s4 1966171168
          %v2003 = vunpack.c.0.s8 %v2002
          %v2004 = vlaneseq
          %v2005 = vshrl.u32 %v2004, 7
          %v2006 = vsub.s32 %v2003, %v2005
          %v2007 = vrot.slane %v1981, %v2006
          %v2009 = vunpack.c.l.s4 1966171168
          %v2010 = vunpack.c.0.s8 %v2009
          %v2011 = vlaneseq
          %v2012 = vshrl.u32 %v2011, 7
          %v2013 = vsub.s32 %v2010, %v2012
          %v2014 = vrot.slane %v1982, %v2013
          %v2016 = vunpack.c.l.s4 1966171168
          %v2017 = vunpack.c.0.s8 %v2016
          %v2018 = vlaneseq
          %v2019 = vshrl.u32 %v2018, 7
          %v2020 = vsub.s32 %v2017, %v2019
          %v2021 = vrot.slane %v1983, %v2020
          %v2023 = vunpack.c.l.s4 1966171168
          %v2024 = vunpack.c.0.s8 %v2023
          %v2025 = vlaneseq
          %v2026 = vshrl.u32 %v2025, 7
          %v2027 = vsub.s32 %v2024, %v2026
          %v2028 = vrot.slane %v1984, %v2027
          %v2030 = vunpack.c.l.s4 1966171168
          %v2031 = vunpack.c.0.s8 %v2030
          %v2032 = vlaneseq
          %v2033 = vshrl.u32 %v2032, 7
          %v2034 = vsub.s32 %v2031, %v2033
          %v2035 = vrot.slane %v1985, %v2034
          %v2037 = vunpack.c.l.s4 1966171168
          %v2038 = vunpack.c.0.s8 %v2037
          %v2039 = vlaneseq
          %v2040 = vshrl.u32 %v2039, 7
          %v2041 = vsub.s32 %v2038, %v2040
          %v2042 = vrot.slane %v1986, %v2041
          %v2043 = vcombine.low %v1993, %v2007
          %v2044 = vcombine.high %v1993, %v2007
          %v2045 = vcombine.low %v2000, %v2014
          %v2046 = vcombine.high %v2000, %v2014
          %v2047 = vcombine.low %v2021, %v2035
          %v2048 = vcombine.high %v2021, %v2035
          %v2049 = vcombine.low %v2028, %v2042
          %v2050 = vcombine.high %v2028, %v2042
          %v2052 = vunpack.c.l.s4 1966171168
          %v2053 = vunpack.c.0.s8 %v2052
          %v2054 = vlaneseq
          %v2055 = vshrl.u32 %v2054, 7
          %v2056 = vsub.s32 %v2053, %v2055
          %v2057 = vrot.slane %v2043, %v2056
          %v2059 = vunpack.c.l.s4 1966171168
          %v2060 = vunpack.c.0.s8 %v2059
          %v2061 = vlaneseq
          %v2062 = vshrl.u32 %v2061, 7
          %v2063 = vsub.s32 %v2060, %v2062
          %v2064 = vrot.slane %v2045, %v2063
          %v2066 = vunpack.c.l.s4 1966171168
          %v2067 = vunpack.c.0.s8 %v2066
          %v2068 = vlaneseq
          %v2069 = vshrl.u32 %v2068, 7
          %v2070 = vsub.s32 %v2067, %v2069
          %v2071 = vrot.slane %v2044, %v2070
          %v2073 = vunpack.c.l.s4 1966171168
          %v2074 = vunpack.c.0.s8 %v2073
          %v2075 = vlaneseq
          %v2076 = vshrl.u32 %v2075, 7
          %v2077 = vsub.s32 %v2074, %v2076
          %v2078 = vrot.slane %v2046, %v2077
          %v2080 = vunpack.c.l.s4 1966171168
          %v2081 = vunpack.c.0.s8 %v2080
          %v2082 = vlaneseq
          %v2083 = vshrl.u32 %v2082, 7
          %v2084 = vsub.s32 %v2081, %v2083
          %v2085 = vrot.slane %v2047, %v2084
          %v2087 = vunpack.c.l.s4 1966171168
          %v2088 = vunpack.c.0.s8 %v2087
          %v2089 = vlaneseq
          %v2090 = vshrl.u32 %v2089, 7
          %v2091 = vsub.s32 %v2088, %v2090
          %v2092 = vrot.slane %v2049, %v2091
          %v2094 = vunpack.c.l.s4 1966171168
          %v2095 = vunpack.c.0.s8 %v2094
          %v2096 = vlaneseq
          %v2097 = vshrl.u32 %v2096, 7
          %v2098 = vsub.s32 %v2095, %v2097
          %v2099 = vrot.slane %v2048, %v2098
          %v2101 = vunpack.c.l.s4 1966171168
          %v2102 = vunpack.c.0.s8 %v2101
          %v2103 = vlaneseq
          %v2104 = vshrl.u32 %v2103, 7
          %v2105 = vsub.s32 %v2102, %v2104
          %v2106 = vrot.slane %v2050, %v2105
          %v2107 = vcombine.low %v2057, %v2085
          %v2108 = vcombine.high %v2057, %v2085
          %v2109 = vcombine.low %v2064, %v2092
          %v2110 = vcombine.high %v2064, %v2092
          %v2111 = vcombine.low %v2071, %v2099
          %v2112 = vcombine.high %v2071, %v2099
          %v2113 = vcombine.low %v2078, %v2106
          %v2114 = vcombine.high %v2078, %v2106
          %v2115 = vsel %vm426, 1, 0
          %v2116 = vsel %vm427, 1, 0
          %v2117 = vsel %vm428, 1, 0
          %v2118 = vsel %vm429, 1, 0
          %v2119 = vsel %vm430, 1, 0
          %v2120 = vsel %vm431, 1, 0
          %v2121 = vsel %vm432, 1, 0
          %v2122 = vsel %vm433, 1, 0
          %v2123 = vsel %vm434, 1, 0
          %v2124 = vsel %vm435, 1, 0
          %v2125 = vsel %vm436, 1, 0
          %v2126 = vsel %vm437, 1, 0
          %v2127 = vsel %vm438, 1, 0
          %v2128 = vsel %vm439, 1, 0
          %v2129 = vsel %vm440, 1, 0
          %v2130 = vsel %vm441, 1, 0
          %vm2131 = vcmp.eq.s32.totalorder %v2115, 1
          %vm2132 = vcmp.eq.s32.totalorder %v2116, 1
          %vm2133 = vcmp.eq.s32.totalorder %v2117, 1
          %vm2134 = vcmp.eq.s32.totalorder %v2118, 1
          %vm2135 = vcmp.eq.s32.totalorder %v2119, 1
          %vm2136 = vcmp.eq.s32.totalorder %v2120, 1
          %vm2137 = vcmp.eq.s32.totalorder %v2121, 1
          %vm2138 = vcmp.eq.s32.totalorder %v2122, 1
          %vm2139 = vcmp.eq.s32.totalorder %v2123, 1
          %vm2140 = vcmp.eq.s32.totalorder %v2124, 1
          %vm2141 = vcmp.eq.s32.totalorder %v2125, 1
          %vm2142 = vcmp.eq.s32.totalorder %v2126, 1
          %vm2143 = vcmp.eq.s32.totalorder %v2127, 1
          %vm2144 = vcmp.eq.s32.totalorder %v2128, 1
          %vm2145 = vcmp.eq.s32.totalorder %v2129, 1
          %vm2146 = vcmp.eq.s32.totalorder %v2130, 1
          %v2147 = vlaneseq
          %v2148 = vshrl.u32 %v2147, 7
          %v2149 = vsub.s32 0, %v2148
          %v2150 = vrot.slane %v2107, %v2149
          %v2151 = vlaneseq
          %v2152 = vshrl.u32 %v2151, 7
          %v2153 = vsub.s32 1, %v2152
          %v2154 = vrot.slane %v2107, %v2153
          %v2155 = vlaneseq
          %v2156 = vshrl.u32 %v2155, 7
          %v2157 = vsub.s32 2, %v2156
          %v2158 = vrot.slane %v2107, %v2157
          %v2159 = vlaneseq
          %v2160 = vshrl.u32 %v2159, 7
          %v2161 = vsub.s32 3, %v2160
          %v2162 = vrot.slane %v2107, %v2161
          %v2163 = vlaneseq
          %v2164 = vshrl.u32 %v2163, 7
          %v2165 = vsub.s32 4, %v2164
          %v2166 = vrot.slane %v2107, %v2165
          %v2167 = vlaneseq
          %v2168 = vshrl.u32 %v2167, 7
          %v2169 = vsub.s32 5, %v2168
          %v2170 = vrot.slane %v2107, %v2169
          %v2171 = vlaneseq
          %v2172 = vshrl.u32 %v2171, 7
          %v2173 = vsub.s32 6, %v2172
          %v2174 = vrot.slane %v2107, %v2173
          %v2175 = vlaneseq
          %v2176 = vshrl.u32 %v2175, 7
          %v2177 = vsub.s32 7, %v2176
          %v2178 = vrot.slane %v2107, %v2177
          %v2179 = vlaneseq
          %v2180 = vshrl.u32 %v2179, 7
          %v2181 = vsub.s32 0, %v2180
          %v2182 = vrot.slane %v2111, %v2181
          %v2183 = vlaneseq
          %v2184 = vshrl.u32 %v2183, 7
          %v2185 = vsub.s32 1, %v2184
          %v2186 = vrot.slane %v2111, %v2185
          %v2187 = vlaneseq
          %v2188 = vshrl.u32 %v2187, 7
          %v2189 = vsub.s32 2, %v2188
          %v2190 = vrot.slane %v2111, %v2189
          %v2191 = vlaneseq
          %v2192 = vshrl.u32 %v2191, 7
          %v2193 = vsub.s32 3, %v2192
          %v2194 = vrot.slane %v2111, %v2193
          %v2195 = vlaneseq
          %v2196 = vshrl.u32 %v2195, 7
          %v2197 = vsub.s32 4, %v2196
          %v2198 = vrot.slane %v2111, %v2197
          %v2199 = vlaneseq
          %v2200 = vshrl.u32 %v2199, 7
          %v2201 = vsub.s32 5, %v2200
          %v2202 = vrot.slane %v2111, %v2201
          %v2203 = vlaneseq
          %v2204 = vshrl.u32 %v2203, 7
          %v2205 = vsub.s32 6, %v2204
          %v2206 = vrot.slane %v2111, %v2205
          %v2207 = vlaneseq
          %v2208 = vshrl.u32 %v2207, 7
          %v2209 = vsub.s32 7, %v2208
          %v2210 = vrot.slane %v2111, %v2209
          %v2211 = vlaneseq
          %v2212 = vshrl.u32 %v2211, 7
          %v2213 = vsub.s32 0, %v2212
          %v2214 = vrot.slane %v2108, %v2213
          %v2215 = vlaneseq
          %v2216 = vshrl.u32 %v2215, 7
          %v2217 = vsub.s32 1, %v2216
          %v2218 = vrot.slane %v2108, %v2217
          %v2219 = vlaneseq
          %v2220 = vshrl.u32 %v2219, 7
          %v2221 = vsub.s32 2, %v2220
          %v2222 = vrot.slane %v2108, %v2221
          %v2223 = vlaneseq
          %v2224 = vshrl.u32 %v2223, 7
          %v2225 = vsub.s32 3, %v2224
          %v2226 = vrot.slane %v2108, %v2225
          %v2227 = vlaneseq
          %v2228 = vshrl.u32 %v2227, 7
          %v2229 = vsub.s32 4, %v2228
          %v2230 = vrot.slane %v2108, %v2229
          %v2231 = vlaneseq
          %v2232 = vshrl.u32 %v2231, 7
          %v2233 = vsub.s32 5, %v2232
          %v2234 = vrot.slane %v2108, %v2233
          %v2235 = vlaneseq
          %v2236 = vshrl.u32 %v2235, 7
          %v2237 = vsub.s32 6, %v2236
          %v2238 = vrot.slane %v2108, %v2237
          %v2239 = vlaneseq
          %v2240 = vshrl.u32 %v2239, 7
          %v2241 = vsub.s32 7, %v2240
          %v2242 = vrot.slane %v2108, %v2241
          %v2243 = vlaneseq
          %v2244 = vshrl.u32 %v2243, 7
          %v2245 = vsub.s32 0, %v2244
          %v2246 = vrot.slane %v2112, %v2245
          %v2247 = vlaneseq
          %v2248 = vshrl.u32 %v2247, 7
          %v2249 = vsub.s32 1, %v2248
          %v2250 = vrot.slane %v2112, %v2249
          %v2251 = vlaneseq
          %v2252 = vshrl.u32 %v2251, 7
          %v2253 = vsub.s32 2, %v2252
          %v2254 = vrot.slane %v2112, %v2253
          %v2255 = vlaneseq
          %v2256 = vshrl.u32 %v2255, 7
          %v2257 = vsub.s32 3, %v2256
          %v2258 = vrot.slane %v2112, %v2257
          %v2259 = vlaneseq
          %v2260 = vshrl.u32 %v2259, 7
          %v2261 = vsub.s32 4, %v2260
          %v2262 = vrot.slane %v2112, %v2261
          %v2263 = vlaneseq
          %v2264 = vshrl.u32 %v2263, 7
          %v2265 = vsub.s32 5, %v2264
          %v2266 = vrot.slane %v2112, %v2265
          %v2267 = vlaneseq
          %v2268 = vshrl.u32 %v2267, 7
          %v2269 = vsub.s32 6, %v2268
          %v2270 = vrot.slane %v2112, %v2269
          %v2271 = vlaneseq
          %v2272 = vshrl.u32 %v2271, 7
          %v2273 = vsub.s32 7, %v2272
          %v2274 = vrot.slane %v2112, %v2273
          %v2275 = vlaneseq
          %v2276 = vshrl.u32 %v2275, 7
          %v2277 = vsub.s32 0, %v2276
          %v2278 = vrot.slane %v2109, %v2277
          %v2279 = vlaneseq
          %v2280 = vshrl.u32 %v2279, 7
          %v2281 = vsub.s32 1, %v2280
          %v2282 = vrot.slane %v2109, %v2281
          %v2283 = vlaneseq
          %v2284 = vshrl.u32 %v2283, 7
          %v2285 = vsub.s32 2, %v2284
          %v2286 = vrot.slane %v2109, %v2285
          %v2287 = vlaneseq
          %v2288 = vshrl.u32 %v2287, 7
          %v2289 = vsub.s32 3, %v2288
          %v2290 = vrot.slane %v2109, %v2289
          %v2291 = vlaneseq
          %v2292 = vshrl.u32 %v2291, 7
          %v2293 = vsub.s32 4, %v2292
          %v2294 = vrot.slane %v2109, %v2293
          %v2295 = vlaneseq
          %v2296 = vshrl.u32 %v2295, 7
          %v2297 = vsub.s32 5, %v2296
          %v2298 = vrot.slane %v2109, %v2297
          %v2299 = vlaneseq
          %v2300 = vshrl.u32 %v2299, 7
          %v2301 = vsub.s32 6, %v2300
          %v2302 = vrot.slane %v2109, %v2301
          %v2303 = vlaneseq
          %v2304 = vshrl.u32 %v2303, 7
          %v2305 = vsub.s32 7, %v2304
          %v2306 = vrot.slane %v2109, %v2305
          %v2307 = vlaneseq
          %v2308 = vshrl.u32 %v2307, 7
          %v2309 = vsub.s32 0, %v2308
          %v2310 = vrot.slane %v2113, %v2309
          %v2311 = vlaneseq
          %v2312 = vshrl.u32 %v2311, 7
          %v2313 = vsub.s32 1, %v2312
          %v2314 = vrot.slane %v2113, %v2313
          %v2315 = vlaneseq
          %v2316 = vshrl.u32 %v2315, 7
          %v2317 = vsub.s32 2, %v2316
          %v2318 = vrot.slane %v2113, %v2317
          %v2319 = vlaneseq
          %v2320 = vshrl.u32 %v2319, 7
          %v2321 = vsub.s32 3, %v2320
          %v2322 = vrot.slane %v2113, %v2321
          %v2323 = vlaneseq
          %v2324 = vshrl.u32 %v2323, 7
          %v2325 = vsub.s32 4, %v2324
          %v2326 = vrot.slane %v2113, %v2325
          %v2327 = vlaneseq
          %v2328 = vshrl.u32 %v2327, 7
          %v2329 = vsub.s32 5, %v2328
          %v2330 = vrot.slane %v2113, %v2329
          %v2331 = vlaneseq
          %v2332 = vshrl.u32 %v2331, 7
          %v2333 = vsub.s32 6, %v2332
          %v2334 = vrot.slane %v2113, %v2333
          %v2335 = vlaneseq
          %v2336 = vshrl.u32 %v2335, 7
          %v2337 = vsub.s32 7, %v2336
          %v2338 = vrot.slane %v2113, %v2337
          %v2339 = vlaneseq
          %v2340 = vshrl.u32 %v2339, 7
          %v2341 = vsub.s32 0, %v2340
          %v2342 = vrot.slane %v2110, %v2341
          %v2343 = vlaneseq
          %v2344 = vshrl.u32 %v2343, 7
          %v2345 = vsub.s32 1, %v2344
          %v2346 = vrot.slane %v2110, %v2345
          %v2347 = vlaneseq
          %v2348 = vshrl.u32 %v2347, 7
          %v2349 = vsub.s32 2, %v2348
          %v2350 = vrot.slane %v2110, %v2349
          %v2351 = vlaneseq
          %v2352 = vshrl.u32 %v2351, 7
          %v2353 = vsub.s32 3, %v2352
          %v2354 = vrot.slane %v2110, %v2353
          %v2355 = vlaneseq
          %v2356 = vshrl.u32 %v2355, 7
          %v2357 = vsub.s32 4, %v2356
          %v2358 = vrot.slane %v2110, %v2357
          %v2359 = vlaneseq
          %v2360 = vshrl.u32 %v2359, 7
          %v2361 = vsub.s32 5, %v2360
          %v2362 = vrot.slane %v2110, %v2361
          %v2363 = vlaneseq
          %v2364 = vshrl.u32 %v2363, 7
          %v2365 = vsub.s32 6, %v2364
          %v2366 = vrot.slane %v2110, %v2365
          %v2367 = vlaneseq
          %v2368 = vshrl.u32 %v2367, 7
          %v2369 = vsub.s32 7, %v2368
          %v2370 = vrot.slane %v2110, %v2369
          %v2371 = vlaneseq
          %v2372 = vshrl.u32 %v2371, 7
          %v2373 = vsub.s32 0, %v2372
          %v2374 = vrot.slane %v2114, %v2373
          %v2375 = vlaneseq
          %v2376 = vshrl.u32 %v2375, 7
          %v2377 = vsub.s32 1, %v2376
          %v2378 = vrot.slane %v2114, %v2377
          %v2379 = vlaneseq
          %v2380 = vshrl.u32 %v2379, 7
          %v2381 = vsub.s32 2, %v2380
          %v2382 = vrot.slane %v2114, %v2381
          %v2383 = vlaneseq
          %v2384 = vshrl.u32 %v2383, 7
          %v2385 = vsub.s32 3, %v2384
          %v2386 = vrot.slane %v2114, %v2385
          %v2387 = vlaneseq
          %v2388 = vshrl.u32 %v2387, 7
          %v2389 = vsub.s32 4, %v2388
          %v2390 = vrot.slane %v2114, %v2389
          %v2391 = vlaneseq
          %v2392 = vshrl.u32 %v2391, 7
          %v2393 = vsub.s32 5, %v2392
          %v2394 = vrot.slane %v2114, %v2393
          %v2395 = vlaneseq
          %v2396 = vshrl.u32 %v2395, 7
          %v2397 = vsub.s32 6, %v2396
          %v2398 = vrot.slane %v2114, %v2397
          %v2399 = vlaneseq
          %v2400 = vshrl.u32 %v2399, 7
          %v2401 = vsub.s32 7, %v2400
          %v2402 = vrot.slane %v2114, %v2401
          %v2467 = vsel %vm2131, %v2150, %v1792
          %v2468 = vsel %vm2132, %v2154, %v1793
          %v2469 = vsel %vm2133, %v2158, %v1794
          %v2470 = vsel %vm2134, %v2162, %v1795
          %v2471 = vsel %vm2135, %v2166, %v1796
          %v2472 = vsel %vm2136, %v2170, %v1797
          %v2473 = vsel %vm2137, %v2174, %v1798
          %v2474 = vsel %vm2138, %v2178, %v1799
          %v2475 = vsel %vm2139, %v2150, %v1800
          %v2476 = vsel %vm2140, %v2154, %v1801
          %v2477 = vsel %vm2141, %v2158, %v1802
          %v2478 = vsel %vm2142, %v2162, %v1803
          %v2479 = vsel %vm2143, %v2166, %v1804
          %v2480 = vsel %vm2144, %v2170, %v1805
          %v2481 = vsel %vm2145, %v2174, %v1806
          %v2482 = vsel %vm2146, %v2178, %v1807
          %v2483 = vsel %vm2131, %v2182, %v1808
          %v2484 = vsel %vm2132, %v2186, %v1809
          %v2485 = vsel %vm2133, %v2190, %v1810
          %v2486 = vsel %vm2134, %v2194, %v1811
          %v2487 = vsel %vm2135, %v2198, %v1812
          %v2488 = vsel %vm2136, %v2202, %v1813
          %v2489 = vsel %vm2137, %v2206, %v1814
          %v2490 = vsel %vm2138, %v2210, %v1815
          %v2491 = vsel %vm2139, %v2182, %v1816
          %v2492 = vsel %vm2140, %v2186, %v1817
          %v2493 = vsel %vm2141, %v2190, %v1818
          %v2494 = vsel %vm2142, %v2194, %v1819
          %v2495 = vsel %vm2143, %v2198, %v1820
          %v2496 = vsel %vm2144, %v2202, %v1821
          %v2497 = vsel %vm2145, %v2206, %v1822
          %v2498 = vsel %vm2146, %v2210, %v1823
          %v2499 = vsel %vm2131, %v2214, %v1824
          %v2500 = vsel %vm2132, %v2218, %v1825
          %v2501 = vsel %vm2133, %v2222, %v1826
          %v2502 = vsel %vm2134, %v2226, %v1827
          %v2503 = vsel %vm2135, %v2230, %v1828
          %v2504 = vsel %vm2136, %v2234, %v1829
          %v2505 = vsel %vm2137, %v2238, %v1830
          %v2506 = vsel %vm2138, %v2242, %v1831
          %v2507 = vsel %vm2139, %v2214, %v1832
          %v2508 = vsel %vm2140, %v2218, %v1833
          %v2509 = vsel %vm2141, %v2222, %v1834
          %v2510 = vsel %vm2142, %v2226, %v1835
          %v2511 = vsel %vm2143, %v2230, %v1836
          %v2512 = vsel %vm2144, %v2234, %v1837
          %v2513 = vsel %vm2145, %v2238, %v1838
          %v2514 = vsel %vm2146, %v2242, %v1839
          %v2515 = vsel %vm2131, %v2246, %v1840
          %v2516 = vsel %vm2132, %v2250, %v1841
          %v2517 = vsel %vm2133, %v2254, %v1842
          %v2518 = vsel %vm2134, %v2258, %v1843
          %v2519 = vsel %vm2135, %v2262, %v1844
          %v2520 = vsel %vm2136, %v2266, %v1845
          %v2521 = vsel %vm2137, %v2270, %v1846
          %v2522 = vsel %vm2138, %v2274, %v1847
          %v2523 = vsel %vm2139, %v2246, %v1848
          %v2524 = vsel %vm2140, %v2250, %v1849
          %v2525 = vsel %vm2141, %v2254, %v1850
          %v2526 = vsel %vm2142, %v2258, %v1851
          %v2527 = vsel %vm2143, %v2262, %v1852
          %v2528 = vsel %vm2144, %v2266, %v1853
          %v2529 = vsel %vm2145, %v2270, %v1854
          %v2530 = vsel %vm2146, %v2274, %v1855
          %v2531 = vsel %vm2131, %v2278, %v1856
          %v2532 = vsel %vm2132, %v2282, %v1857
          %v2533 = vsel %vm2133, %v2286, %v1858
          %v2534 = vsel %vm2134, %v2290, %v1859
          %v2535 = vsel %vm2135, %v2294, %v1860
          %v2536 = vsel %vm2136, %v2298, %v1861
          %v2537 = vsel %vm2137, %v2302, %v1862
          %v2538 = vsel %vm2138, %v2306, %v1863
          %v2539 = vsel %vm2139, %v2278, %v1864
          %v2540 = vsel %vm2140, %v2282, %v1865
          %v2541 = vsel %vm2141, %v2286, %v1866
          %v2542 = vsel %vm2142, %v2290, %v1867
          %v2543 = vsel %vm2143, %v2294, %v1868
          %v2544 = vsel %vm2144, %v2298, %v1869
          %v2545 = vsel %vm2145, %v2302, %v1870
          %v2546 = vsel %vm2146, %v2306, %v1871
          %v2547 = vsel %vm2131, %v2310, %v1872
          %v2548 = vsel %vm2132, %v2314, %v1873
          %v2549 = vsel %vm2133, %v2318, %v1874
          %v2550 = vsel %vm2134, %v2322, %v1875
          %v2551 = vsel %vm2135, %v2326, %v1876
          %v2552 = vsel %vm2136, %v2330, %v1877
          %v2553 = vsel %vm2137, %v2334, %v1878
          %v2554 = vsel %vm2138, %v2338, %v1879
          %v2555 = vsel %vm2139, %v2310, %v1880
          %v2556 = vsel %vm2140, %v2314, %v1881
          %v2557 = vsel %vm2141, %v2318, %v1882
          %v2558 = vsel %vm2142, %v2322, %v1883
          %v2559 = vsel %vm2143, %v2326, %v1884
          %v2560 = vsel %vm2144, %v2330, %v1885
          %v2561 = vsel %vm2145, %v2334, %v1886
          %v2562 = vsel %vm2146, %v2338, %v1887
          %v2563 = vsel %vm2131, %v2342, %v1888
          %v2564 = vsel %vm2132, %v2346, %v1889
          %v2565 = vsel %vm2133, %v2350, %v1890
          %v2566 = vsel %vm2134, %v2354, %v1891
          %v2567 = vsel %vm2135, %v2358, %v1892
          %v2568 = vsel %vm2136, %v2362, %v1893
          %v2569 = vsel %vm2137, %v2366, %v1894
          %v2570 = vsel %vm2138, %v2370, %v1895
          %v2571 = vsel %vm2139, %v2342, %v1896
          %v2572 = vsel %vm2140, %v2346, %v1897
          %v2573 = vsel %vm2141, %v2350, %v1898
          %v2574 = vsel %vm2142, %v2354, %v1899
          %v2575 = vsel %vm2143, %v2358, %v1900
          %v2576 = vsel %vm2144, %v2362, %v1901
          %v2577 = vsel %vm2145, %v2366, %v1902
          %v2578 = vsel %vm2146, %v2370, %v1903
          %v2579 = vsel %vm2131, %v2374, %v1904
          %v2580 = vsel %vm2132, %v2378, %v1905
          %v2581 = vsel %vm2133, %v2382, %v1906
          %v2582 = vsel %vm2134, %v2386, %v1907
          %v2583 = vsel %vm2135, %v2390, %v1908
          %v2584 = vsel %vm2136, %v2394, %v1909
          %v2585 = vsel %vm2137, %v2398, %v1910
          %v2586 = vsel %vm2138, %v2402, %v1911
          %v2587 = vsel %vm2139, %v2374, %v1912
          %v2588 = vsel %vm2140, %v2378, %v1913
          %v2589 = vsel %vm2141, %v2382, %v1914
          %v2590 = vsel %vm2142, %v2386, %v1915
          %v2591 = vsel %vm2143, %v2390, %v1916
          %v2592 = vsel %vm2144, %v2394, %v1917
          %v2593 = vsel %vm2145, %v2398, %v1918
          %v2594 = vsel %vm2146, %v2402, %v1919
          %2595 = vst [vmem:[%s233] sm:$0xff] %v2467
          %2596 = vst [vmem:[%s233 + $0x8] sm:$0xff] %v2468
          %2597 = vst [vmem:[%s233 + $0x10] sm:$0xff] %v2469
          %2598 = vst [vmem:[%s233 + $0x18] sm:$0xff] %v2470
          %2599 = vst [vmem:[%s233 + $0x20] sm:$0xff] %v2471
          %2600 = vst [vmem:[%s233 + $0x28] sm:$0xff] %v2472
          %2601 = vst [vmem:[%s233 + $0x30] sm:$0xff] %v2473
          %2602 = vst [vmem:[%s233 + $0x38] sm:$0xff] %v2474
          %2603 = vst [vmem:[%s233 + $0x40] sm:$0xff] %v2475
          %2604 = vst [vmem:[%s233 + $0x48] sm:$0xff] %v2476
          %2605 = vst [vmem:[%s233 + $0x50] sm:$0xff] %v2477
          %2606 = vst [vmem:[%s233 + $0x58] sm:$0xff] %v2478
          %2607 = vst [vmem:[%s233 + $0x60] sm:$0xff] %v2479
          %2608 = vst [vmem:[%s233 + $0x68] sm:$0xff] %v2480
          %2609 = vst [vmem:[%s233 + $0x70] sm:$0xff] %v2481
          %2610 = vst [vmem:[%s233 + $0x78] sm:$0xff] %v2482
          %2611 = vst [vmem:[%s233 + $0x80] sm:$0xff] %v2483
          %2612 = vst [vmem:[%s233 + $0x88] sm:$0xff] %v2484
          %2613 = vst [vmem:[%s233 + $0x90] sm:$0xff] %v2485
          %2614 = vst [vmem:[%s233 + $0x98] sm:$0xff] %v2486
          %2615 = vst [vmem:[%s233 + $0xa0] sm:$0xff] %v2487
          %2616 = vst [vmem:[%s233 + $0xa8] sm:$0xff] %v2488
          %2617 = vst [vmem:[%s233 + $0xb0] sm:$0xff] %v2489
          %2618 = vst [vmem:[%s233 + $0xb8] sm:$0xff] %v2490
          %2619 = vst [vmem:[%s233 + $0xc0] sm:$0xff] %v2491
          %2620 = vst [vmem:[%s233 + $0xc8] sm:$0xff] %v2492
          %2621 = vst [vmem:[%s233 + $0xd0] sm:$0xff] %v2493
          %2622 = vst [vmem:[%s233 + $0xd8] sm:$0xff] %v2494
          %2623 = vst [vmem:[%s233 + $0xe0] sm:$0xff] %v2495
          %2624 = vst [vmem:[%s233 + $0xe8] sm:$0xff] %v2496
          %2625 = vst [vmem:[%s233 + $0xf0] sm:$0xff] %v2497
          %2626 = vst [vmem:[%s233 + $0xf8] sm:$0xff] %v2498
          %2627 = vst [vmem:[%s233 + $0x100] sm:$0xff] %v2499
          %2628 = vst [vmem:[%s233 + $0x108] sm:$0xff] %v2500
          %2629 = vst [vmem:[%s233 + $0x110] sm:$0xff] %v2501
          %2630 = vst [vmem:[%s233 + $0x118] sm:$0xff] %v2502
          %2631 = vst [vmem:[%s233 + $0x120] sm:$0xff] %v2503
          %2632 = vst [vmem:[%s233 + $0x128] sm:$0xff] %v2504
          %2633 = vst [vmem:[%s233 + $0x130] sm:$0xff] %v2505
          %2634 = vst [vmem:[%s233 + $0x138] sm:$0xff] %v2506
          %2635 = vst [vmem:[%s233 + $0x140] sm:$0xff] %v2507
          %2636 = vst [vmem:[%s233 + $0x148] sm:$0xff] %v2508
          %2637 = vst [vmem:[%s233 + $0x150] sm:$0xff] %v2509
          %2638 = vst [vmem:[%s233 + $0x158] sm:$0xff] %v2510
          %2639 = vst [vmem:[%s233 + $0x160] sm:$0xff] %v2511
          %2640 = vst [vmem:[%s233 + $0x168] sm:$0xff] %v2512
          %2641 = vst [vmem:[%s233 + $0x170] sm:$0xff] %v2513
          %2642 = vst [vmem:[%s233 + $0x178] sm:$0xff] %v2514
          %2643 = vst [vmem:[%s233 + $0x180] sm:$0xff] %v2515
          %2644 = vst [vmem:[%s233 + $0x188] sm:$0xff] %v2516
          %2645 = vst [vmem:[%s233 + $0x190] sm:$0xff] %v2517
          %2646 = vst [vmem:[%s233 + $0x198] sm:$0xff] %v2518
          %2647 = vst [vmem:[%s233 + $0x1a0] sm:$0xff] %v2519
          %2648 = vst [vmem:[%s233 + $0x1a8] sm:$0xff] %v2520
          %2649 = vst [vmem:[%s233 + $0x1b0] sm:$0xff] %v2521
          %2650 = vst [vmem:[%s233 + $0x1b8] sm:$0xff] %v2522
          %2651 = vst [vmem:[%s233 + $0x1c0] sm:$0xff] %v2523
          %2652 = vst [vmem:[%s233 + $0x1c8] sm:$0xff] %v2524
          %2653 = vst [vmem:[%s233 + $0x1d0] sm:$0xff] %v2525
          %2654 = vst [vmem:[%s233 + $0x1d8] sm:$0xff] %v2526
          %2655 = vst [vmem:[%s233 + $0x1e0] sm:$0xff] %v2527
          %2656 = vst [vmem:[%s233 + $0x1e8] sm:$0xff] %v2528
          %2657 = vst [vmem:[%s233 + $0x1f0] sm:$0xff] %v2529
          %2658 = vst [vmem:[%s233 + $0x1f8] sm:$0xff] %v2530
          %2659 = vst [vmem:[%s233 + $0x200] sm:$0xff] %v2531
          %2660 = vst [vmem:[%s233 + $0x208] sm:$0xff] %v2532
          %2661 = vst [vmem:[%s233 + $0x210] sm:$0xff] %v2533
          %2662 = vst [vmem:[%s233 + $0x218] sm:$0xff] %v2534
          %2663 = vst [vmem:[%s233 + $0x220] sm:$0xff] %v2535
          %2664 = vst [vmem:[%s233 + $0x228] sm:$0xff] %v2536
          %2665 = vst [vmem:[%s233 + $0x230] sm:$0xff] %v2537
          %2666 = vst [vmem:[%s233 + $0x238] sm:$0xff] %v2538
          %2667 = vst [vmem:[%s233 + $0x240] sm:$0xff] %v2539
          %2668 = vst [vmem:[%s233 + $0x248] sm:$0xff] %v2540
          %2669 = vst [vmem:[%s233 + $0x250] sm:$0xff] %v2541
          %2670 = vst [vmem:[%s233 + $0x258] sm:$0xff] %v2542
          %2671 = vst [vmem:[%s233 + $0x260] sm:$0xff] %v2543
          %2672 = vst [vmem:[%s233 + $0x268] sm:$0xff] %v2544
          %2673 = vst [vmem:[%s233 + $0x270] sm:$0xff] %v2545
          %2674 = vst [vmem:[%s233 + $0x278] sm:$0xff] %v2546
          %2675 = vst [vmem:[%s233 + $0x280] sm:$0xff] %v2547
          %2676 = vst [vmem:[%s233 + $0x288] sm:$0xff] %v2548
          %2677 = vst [vmem:[%s233 + $0x290] sm:$0xff] %v2549
          %2678 = vst [vmem:[%s233 + $0x298] sm:$0xff] %v2550
          %2679 = vst [vmem:[%s233 + $0x2a0] sm:$0xff] %v2551
          %2680 = vst [vmem:[%s233 + $0x2a8] sm:$0xff] %v2552
          %2681 = vst [vmem:[%s233 + $0x2b0] sm:$0xff] %v2553
          %2682 = vst [vmem:[%s233 + $0x2b8] sm:$0xff] %v2554
          %2683 = vst [vmem:[%s233 + $0x2c0] sm:$0xff] %v2555
          %2684 = vst [vmem:[%s233 + $0x2c8] sm:$0xff] %v2556
          %2685 = vst [vmem:[%s233 + $0x2d0] sm:$0xff] %v2557
          %2686 = vst [vmem:[%s233 + $0x2d8] sm:$0xff] %v2558
          %2687 = vst [vmem:[%s233 + $0x2e0] sm:$0xff] %v2559
          %2688 = vst [vmem:[%s233 + $0x2e8] sm:$0xff] %v2560
          %2689 = vst [vmem:[%s233 + $0x2f0] sm:$0xff] %v2561
          %2690 = vst [vmem:[%s233 + $0x2f8] sm:$0xff] %v2562
          %2691 = vst [vmem:[%s233 + $0x300] sm:$0xff] %v2563
          %2692 = vst [vmem:[%s233 + $0x308] sm:$0xff] %v2564
          %2693 = vst [vmem:[%s233 + $0x310] sm:$0xff] %v2565
          %2694 = vst [vmem:[%s233 + $0x318] sm:$0xff] %v2566
          %2695 = vst [vmem:[%s233 + $0x320] sm:$0xff] %v2567
          %2696 = vst [vmem:[%s233 + $0x328] sm:$0xff] %v2568
          %2697 = vst [vmem:[%s233 + $0x330] sm:$0xff] %v2569
          %2698 = vst [vmem:[%s233 + $0x338] sm:$0xff] %v2570
          %2699 = vst [vmem:[%s233 + $0x340] sm:$0xff] %v2571
          %2700 = vst [vmem:[%s233 + $0x348] sm:$0xff] %v2572
          %2701 = vst [vmem:[%s233 + $0x350] sm:$0xff] %v2573
          %2702 = vst [vmem:[%s233 + $0x358] sm:$0xff] %v2574
          %2703 = vst [vmem:[%s233 + $0x360] sm:$0xff] %v2575
          %2704 = vst [vmem:[%s233 + $0x368] sm:$0xff] %v2576
          %2705 = vst [vmem:[%s233 + $0x370] sm:$0xff] %v2577
          %2706 = vst [vmem:[%s233 + $0x378] sm:$0xff] %v2578
          %2707 = vst [vmem:[%s233 + $0x380] sm:$0xff] %v2579
          %2708 = vst [vmem:[%s233 + $0x388] sm:$0xff] %v2580
          %2709 = vst [vmem:[%s233 + $0x390] sm:$0xff] %v2581
          %2710 = vst [vmem:[%s233 + $0x398] sm:$0xff] %v2582
          %2711 = vst [vmem:[%s233 + $0x3a0] sm:$0xff] %v2583
          %2712 = vst [vmem:[%s233 + $0x3a8] sm:$0xff] %v2584
          %2713 = vst [vmem:[%s233 + $0x3b0] sm:$0xff] %v2585
          %2714 = vst [vmem:[%s233 + $0x3b8] sm:$0xff] %v2586
          %2715 = vst [vmem:[%s233 + $0x3c0] sm:$0xff] %v2587
          %2716 = vst [vmem:[%s233 + $0x3c8] sm:$0xff] %v2588
          %2717 = vst [vmem:[%s233 + $0x3d0] sm:$0xff] %v2589
          %2718 = vst [vmem:[%s233 + $0x3d8] sm:$0xff] %v2590
          %2719 = vst [vmem:[%s233 + $0x3e0] sm:$0xff] %v2591
          %2720 = vst [vmem:[%s233 + $0x3e8] sm:$0xff] %v2592
          %2721 = vst [vmem:[%s233 + $0x3f0] sm:$0xff] %v2593
          %2722 = vst [vmem:[%s233 + $0x3f8] sm:$0xff] %v2594
        $region52: #{tpu_custom_call.1} parent=31 // pred_fallthru
          _
        %s2723 = sand.u32 %s124, 1
        %s2724 = scalar_lea.sflag [#allocation6], %s2723
        %s2725 = sand.u32 %s124, 1
        %s2726 = smul.addr %s2725, 1024
        %s2727 = scalar_lea.vmem [#allocation10], %s2726
        // Predicated region
        $region53: #{tpu_custom_call.1} parent=31 // pred_check
          %p2728 = pneg %p134
        $region54: #{tpu_custom_call.1} parent=31 // pred_check_branch
          %2730 = sbr.rel (%p2728) target = $region56
        $region55: #{tpu_custom_call.1} parent=31 // pred_region
          #allocation12 [shape = 'u32[6]{0}', space=smem, size = 0x18, scoped, tag = 'DMA stride descriptor']
          %s2731 = smul.u32 2, %s29
          %s2732 = smul.u32 8, %s28
          %s2734 = ssub.s32 16384, 16384
          %2735 = vsyncadd %s2724, %s2734
          %s2736 = smul.addr %s2731, 8
          %s2737 = sadd.s32 %s2732, %s2736
          %s2738 = smul.addr %s2737, 128
          %s2739 = scalar_lea.hbm %s4, %s2738
          %s2741 = sshll.u32 1, 14
          %s2742 = sxor.u32 4294967295, %s2741
          %s2745 = sshll.u32 7, 18
          %s2746 = sxor.u32 4294967295, %s2745
          %s2747 = sand.u32 0, %s2746
          %s2749 = sor.u32 %s2747, 0
          %s2751 = sshll.u32 3, 24
          %s2752 = sxor.u32 4294967295, %s2751
          %s2753 = sand.u32 %s2749, %s2752
          %s2755 = sor.u32 %s2753, 0
          %s2756 = sshll.u32 %s2727, 4
          %s2757 = int_to_ptr.vmem [resolvable:$true] %s2756
          %2763 = sst [smem:[#allocation12]] 2048
          %s2764 = scalar_lea.smem [#allocation12], 1
          %2765 = sst [smem:[%s2764]] 32768
          %s2766 = scalar_lea.smem [#allocation12], 2
          %2767 = sst [smem:[%s2766]] 2
          %s2768 = scalar_lea.smem [#allocation12], 3
          %2769 = sst [smem:[%s2768]] 1024
          %s2770 = scalar_lea.smem [#allocation12], 4
          %2771 = sst [smem:[%s2770]] 1024
          %s2772 = scalar_lea.smem [#allocation12], 5
          %2773 = sst [smem:[%s2772]] 64
          %2775 = dma.general %s2757, 16384, %s2739, %s2724, [#allocation11], [#allocation12], %s2755, 0
        $region56: #{tpu_custom_call.1} parent=31 // pred_fallthru
          _
      $region32: #{tpu_custom_call.1} parent=5 // pred_fallthru
        _
      %p2776 = scmp.le.s32.totalorder 2, %s19
      // Predicated region
      $region57: #{tpu_custom_call.1} parent=5 // pred_check
        %p2777 = pneg %p2776
      $region58: #{tpu_custom_call.1} parent=5 // pred_check_branch
        %2779 = sbr.rel (%p2777) target = $region60
      $region59: #{tpu_custom_call.1} parent=5 // pred_region
        %s2780 = ssub.s32 %s19, 2
        // Predicated region
        $region61: #{tpu_custom_call.1} parent=59 // pred_check
          %p2781 = pneg %p140
        $region62: #{tpu_custom_call.1} parent=59 // pred_check_branch
          %2783 = sbr.rel (%p2781) target = $region64
        $region63: #{tpu_custom_call.1} parent=59 // pred_region
          %s2784 = sand.u32 %s125, 1
          %s2785 = scalar_lea.sflag [#allocation6], %s2784
          %s2786 = sand.u32 %s125, 1
          %s2787 = smul.addr %s2786, 1024
          %s2788 = scalar_lea.vmem [#allocation10], %s2787
          %2789 = dma.done %s2785, 16384
        $region64: #{tpu_custom_call.1} parent=59 // pred_fallthru
          _
      $region60: #{tpu_custom_call.1} parent=5 // pred_fallthru
        _
    $region6: #{tpu_custom_call.1} parent=1 // loop_footer
      %s23 = sadd.s32 1, %s19
    $region7: #{tpu_custom_call.1} parent=1 // loop_footer_branch
      %18 = sbr.rel target = $region3
    $region8: #{tpu_custom_call.1} parent=1 // loop_exit
      _
    %2790 = vsyncpa [#allocation5], 1
    %s2791 = scalar_lea.sflag [#allocation5], 1
    %2792 = vsyncpa %s2791, 1
    %2793 = vsyncpa [#allocation8], 1
    %2794 = vsyncpa [#allocation6], 1
    %s2795 = scalar_lea.sflag [#allocation6], 1
    %2796 = vsyncpa %s2795, 1

</llo_original>
